<compile_context>
chip_gen: v5e
topology: v5e:2x2
jax: 0.10.0
libtpu: 0.0.40
codegen_flags: <defaults>
</compile_context>

<pallas_src>
import math
import numpy as np
import jax
import jax.numpy as jnp
from jax.experimental import pallas as pl
from jax.experimental.pallas import tpu as pltpu

# ---- model sizes (small, consistent with the module's forward) --------------
B, S, H, V = 2, 8, 32, 100          # batch, seq len, hidden_size, vocab
NH = 4                              # attention heads (encoder + MultiheadAttention)
DH = H // NH
FF = 4 * H                          # encoder FFN width
T = S - 1                           # LSTM sequence length (tokens after BOS)
MLP_HID, NCLS = 64, 3               # MLP layers = [2*H, 64, 3]  (XNLI: 3 classes)
SCALE = 1.0 / math.sqrt(DH)

# ---- bf16 weight-slab row offsets (all blocks padded to 128 lanes) -----------
OFF_P, OFF_WQKV, OFF_WO, OFF_WF1, OFF_WF2 = 0, 16, 48, 80, 112
OFF_WIH, OFF_WHH = 240, 272
OFF_MWQ, OFF_MWK, OFF_MWV, OFF_MWO = 304, 336, 368, 400
OFF_W1A, OFF_W1B, OFF_W2 = 432, 464, 496
WB_ROWS = 560

# ---- f32 bias/constant-slab row indices --------------------------------------
(ROW_BQKV, ROW_BO, ROW_G1, ROW_BE1, ROW_BF1, ROW_BF2, ROW_G2, ROW_BE2,
 ROW_LB, ROW_MBQ, ROW_MBK, ROW_MBV, ROW_MBO, ROW_B1, ROW_B2) = range(15)
NBIAS = 16                          # bias rows 0..14, row 15 padding
OFF_SEG, OFF_SEGT, OFF_R = 16, 48, 56
BS_ROWS = 64


def _layernorm(x, g, b, eps=1e-5):
    mu = jnp.mean(x, axis=-1, keepdims=True)
    var = jnp.mean((x - mu) ** 2, axis=-1, keepdims=True)
    return (x - mu) * jax.lax.rsqrt(var + eps) * g + b


# ===================== single fused kernel ===================================
def fused_kernel(x_ref, mask_ref, wb_ref, bs_ref, out_ref):
    f32, bf16 = jnp.float32, jnp.bfloat16

    x = x_ref[...]                                   # (B*S, H) f32, row = b*S + s
    x_b = x.astype(bf16)
    mask16 = mask_ref[...]                           # (B*S, B*S) additive mask (hoisted)

    # ---- static views into the two weight slabs --------------------------------
    P    = wb_ref[OFF_P:OFF_P + B * S, 0:B * S]      # (16,16) 0/1 selection (t-major + BOS)
    wqkv = wb_ref[OFF_WQKV:OFF_WQKV + H, :]          # (32,128), lanes 96.. are 0
    wo_e = wb_ref[OFF_WO:OFF_WO + H, :]              # (32,128), lanes 32.. are 0
    wf1  = wb_ref[OFF_WF1:OFF_WF1 + H, :]            # (32,128)
    wf2  = wb_ref[OFF_WF2:OFF_WF2 + FF, :]           # (128,128), lanes 32.. are 0
    wih  = wb_ref[OFF_WIH:OFF_WIH + H, :]            # (32,128)  (g cols pre-scaled x2)
    whh  = wb_ref[OFF_WHH:OFF_WHH + H, :]            # (32,128)  loaded once, stays stationary
    mwq  = wb_ref[OFF_MWQ:OFF_MWQ + H, :]
    mwk  = wb_ref[OFF_MWK:OFF_MWK + H, :]
    mwv  = wb_ref[OFF_MWV:OFF_MWV + H, :]
    mwo  = wb_ref[OFF_MWO:OFF_MWO + H, :]
    w1a  = wb_ref[OFF_W1A:OFF_W1A + H, :]
    w1b  = wb_ref[OFF_W1B:OFF_W1B + H, :]
    w2   = wb_ref[OFF_W2:OFF_W2 + MLP_HID, :]        # (64,128), lanes 3.. are 0

    biases = bs_ref[0:NBIAS, :]                      # (16,128) f32, one aligned load
    bqkv = biases[ROW_BQKV:ROW_BQKV + 1, :]          # (1,128)
    bo_e = biases[ROW_BO:ROW_BO + 1, 0:H]
    g1   = biases[ROW_G1:ROW_G1 + 1, 0:H]
    be1  = biases[ROW_BE1:ROW_BE1 + 1, 0:H]
    bf1  = biases[ROW_BF1:ROW_BF1 + 1, :]
    bf2  = biases[ROW_BF2:ROW_BF2 + 1, 0:H]
    g2   = biases[ROW_G2:ROW_G2 + 1, 0:H]
    be2  = biases[ROW_BE2:ROW_BE2 + 1, 0:H]
    lb   = biases[ROW_LB:ROW_LB + 1, :]              # (1,128)  b_ih + b_hh, g cols x2
    mbq  = biases[ROW_MBQ:ROW_MBQ + 1, 0:H]
    mbk  = biases[ROW_MBK:ROW_MBK + 1, 0:H]
    mbv  = biases[ROW_MBV:ROW_MBV + 1, 0:H]
    mbo  = biases[ROW_MBO:ROW_MBO + 1, 0:H]
    b1   = biases[ROW_B1:ROW_B1 + 1, 0:MLP_HID]
    b2   = biases[ROW_B2:ROW_B2 + 1, 0:NCLS]
    seg  = bs_ref[OFF_SEG:OFF_SEG + H, 0:NH]         # (32,4)  lane -> head one-hot
    segt = bs_ref[OFF_SEGT:OFF_SEGT + NH, 0:H]       # (4,32)  head -> lane one-hot
    Rsum = bs_ref[OFF_R:OFF_R + B, 0:T * B]          # (2,14)  sum-over-t one-hot

    # ---------- XLM-R stand-in encoder layer (batch folded into rows) -----------
    qkv = jnp.dot(x_b, wqkv, preferred_element_type=f32) + bqkv      # (16,128): q|k|v|0
    qkv_b = qkv.astype(bf16)
    ctx_heads = []
    for h in range(NH):                               # NH = 4, fully unrolled
        qh = qkv_b[:, h * DH:(h + 1) * DH]            # (16,8)
        kh = qkv_b[:, H + h * DH: H + (h + 1) * DH]
        vh = qkv_b[:, 2 * H + h * DH: 2 * H + (h + 1) * DH]
        s = jax.lax.dot_general(qh, kh, (((1,), (1,)), ((), ())),
                                preferred_element_type=f32) * SCALE + mask16  # (16,16)
        m = jnp.max(s, axis=-1, keepdims=True)
        e = jnp.exp(s - m)
        p = e * pl.reciprocal(jnp.sum(e, axis=-1, keepdims=True), approx=True)
        ctx_heads.append(jnp.dot(p.astype(bf16), vh, preferred_element_type=f32))  # (16,8)
    ctx = jnp.concatenate(ctx_heads, axis=-1)                         # (16,32)
    attn = jnp.dot(ctx.astype(bf16), wo_e, preferred_element_type=f32)[:, :H] + bo_e

    x1 = _layernorm(x + attn, g1, be1)
    # TODO(synk): jax.nn.gelu is the tanh approximation; HF XLM-R uses exact erf-GELU.
    ff = jax.nn.gelu(jnp.dot(x1.astype(bf16), wf1, preferred_element_type=f32) + bf1)
    ff2 = jnp.dot(ff.astype(bf16), wf2, preferred_element_type=f32)[:, :H] + bf2
    enc = _layernorm(x1 + ff2, g2, be2)                               # (16,32)

    # ---------- row selection: t-major LSTM tokens + BOS rows, one matmul -------
    enc_b = enc.astype(bf16)
    sel = jnp.dot(P, enc_b, preferred_element_type=f32)   # rows 0..13: (t,b), 14..15: BOS
    bos = sel[T * B:T * B + B, :]                          # (B, H)

    # ---------- LSTM over tokens 1..S-1, whole batch advances together ----------
    gx = jnp.dot(sel.astype(bf16), wih, preferred_element_type=f32) + lb   # (16,128)
    h_t = jnp.zeros((B, H), f32)
    c_t = jnp.zeros((B, H), f32)
    hs = []
    for t in range(T):                                # T = 7, fully unrolled recurrence
        gpre = gx[B * t:B * (t + 1), :] + jnp.dot(h_t.astype(bf16), whh,
                                                  preferred_element_type=f32)   # (2,128)
        sig = jax.nn.sigmoid(gpre)                    # ONE full-width sigmoid per step
        i_g = sig[:, 0:H]                             # PyTorch gate order: i, f, g, o
        f_g = sig[:, H:2 * H]
        g_g = 2.0 * sig[:, 2 * H:3 * H] - 1.0         # == tanh(g_pre) (g cols pre-scaled x2)
        o_g = sig[:, 3 * H:4 * H]
        c_t = f_g * c_t + i_g * g_g
        h_t = o_g * jnp.tanh(c_t)
        hs.append(h_t)

    # ---------- MultiheadAttention(bos, lstm_out, lstm_out), single query -------
    kv_b = jnp.concatenate(hs, axis=0).astype(bf16)        # (T*B, H), row = t*B + b
    bos_b = bos.astype(bf16)
    q_m = jnp.dot(bos_b, mwq, preferred_element_type=f32)[:, :H] + mbq   # (2,32)
    k_m = jnp.dot(kv_b, mwk, preferred_element_type=f32)[:, :H] + mbk    # (14,32)
    v_m = jnp.dot(kv_b, mwv, preferred_element_type=f32)[:, :H] + mbv    # (14,32)
    q_rep = jnp.concatenate([q_m] * T, axis=0)             # (14,32), row t*B+b = q_m[b]
    sc = jnp.dot(q_rep * k_m, seg, preferred_element_type=f32) * SCALE   # (14,4)
    # softmax over t per (b,h); subtract one global constant (valid: constant per group),
    # reductions over t done with 2-D one-hot matmuls (no sub-8-sublane reshapes).
    m_g = jnp.max(jnp.max(sc, axis=-1, keepdims=True), axis=0, keepdims=True)   # (1,1)
    e = jnp.exp(sc - m_g)                                  # (14,4)
    denom = jnp.dot(Rsum, e, preferred_element_type=f32)   # (2,4) = sum over t
    inv = pl.reciprocal(denom, approx=True)
    p = e * jnp.concatenate([inv] * T, axis=0)             # (14,4)
    p_lanes = jnp.dot(p, segt, preferred_element_type=f32) # (14,32) head prob -> lanes
    ctx_m = jnp.dot(Rsum, p_lanes * v_m, preferred_element_type=f32)     # (2,32)
    attn_out = jnp.dot(ctx_m.astype(bf16), mwo, preferred_element_type=f32)[:, :H] + mbo

    # ---------- MLP head [2H, 64, 3] + exact log_softmax ------------------------
    h1 = jnp.maximum(
        jnp.dot(bos_b, w1a, preferred_element_type=f32)[:, :MLP_HID]
        + jnp.dot(attn_out.astype(bf16), w1b, preferred_element_type=f32)[:, :MLP_HID]
        + b1, 0.0)                                          # (2,64)
    logits = jnp.dot(h1.astype(bf16), w2, preferred_element_type=f32)[:, :NCLS] + b2
    mx = jnp.max(logits, axis=-1, keepdims=True)
    lse = mx + jnp.log(jnp.sum(jnp.exp(logits - mx), axis=-1, keepdims=True))
    out_ref[...] = logits - lse                             # log_softmax(dim=1)


# =============== wrapper ======================================================
def xlmr_xnli_forward(prep, input_ids, attention_mask):
    # embedding lookup = JAX glue (gather); fold batch into rows
    x = (prep['emb_word'][input_ids] + prep['emb_pos'][None, :, :]).reshape(B * S, H)
    # block-diagonal (same-batch) + key-padding mask, merged once on the host side
    idx = jnp.arange(B * S)
    same = (idx[:, None] // S) == (idx[None, :] // S)
    key_ok = (attention_mask.reshape(-1) > 0)[None, :]
    mask16 = jnp.where(same & key_ok, 0.0, -1e9).astype(jnp.float32)

    vmem = pltpu.MemorySpace.VMEM
    return pl.pallas_call(
        fused_kernel,
        out_shape=jax.ShapeDtypeStruct((B, NCLS), jnp.float32),
        in_specs=[pl.BlockSpec(memory_space=vmem)] * 4,
        out_specs=pl.BlockSpec(memory_space=vmem),
    )(x, mask16, prep['wb'], prep['bs'])


# =============== deterministic parameter init ================================
def init_params(key):
    ks = list(jax.random.split(key, 64))
    it = iter(ks)

    def nrm(shape, scale=0.05):
        return jax.random.normal(next(it), shape, jnp.float32) * scale

    p = {}
    p['emb_word'] = nrm((V, H), 0.1)
    p['emb_pos'] = nrm((S, H), 0.1)
    for n in ['wq', 'wk', 'wv', 'wo']:
        p[f'enc_{n}'] = nrm((H, H))
    for n in ['bq', 'bk', 'bv', 'bo']:
        p[f'enc_{n}'] = nrm((1, H))
    p['enc_g1'] = jnp.ones((1, H), jnp.float32)
    p['enc_be1'] = jnp.zeros((1, H), jnp.float32)
    p['enc_g2'] = jnp.ones((1, H), jnp.float32)
    p['enc_be2'] = jnp.zeros((1, H), jnp.float32)
    p['enc_wf1'] = nrm((H, FF))
    p['enc_bf1'] = nrm((1, FF))
    p['enc_wf2'] = nrm((FF, H))
    p['enc_bf2'] = nrm((1, H))
    # LSTM (input_size=H, hidden_size=H, batch_first=True); gate order [i, f, g, o]
    p['lstm_wih'] = nrm((H, 4 * H))
    p['lstm_whh'] = nrm((H, 4 * H))
    p['lstm_bih'] = nrm((1, 4 * H))
    p['lstm_bhh'] = nrm((1, 4 * H))
    # MultiheadAttention (embed_dim=H, num_heads=NH, batch_first=True)
    for n in ['wq', 'wk', 'wv', 'wo']:
        p[f'mha_{n}'] = nrm((H, H))
    for n in ['bq', 'bk', 'bv', 'bo']:
        p[f'mha_{n}'] = nrm((1, H))
    # MLP: [2H, MLP_HID, NCLS]
    p['mlp_w1'] = nrm((2 * H, MLP_HID))
    p['mlp_b1'] = nrm((1, MLP_HID))
    p['mlp_w2'] = nrm((MLP_HID, NCLS))
    p['mlp_b2'] = nrm((1, NCLS))
    return p


def prepare_params(p):
    """Pack all weights into two contiguous VMEM slabs (bf16 matmul weights, f32 rest)."""
    f32, bf16 = jnp.float32, jnp.bfloat16

    def pad128(a, rows=None):
        a = jnp.asarray(a, f32)
        r, c = a.shape
        rows = r if rows is None else rows
        return jnp.pad(a, ((0, rows - r), (0, 128 - c)))

    # selection matrix: rows 0..13 pick token (b, t+1) in t-major order, rows 14..15 pick BOS
    Pm = np.zeros((B * S, B * S), np.float32)
    for r in range(T * B):
        t, b = r // B, r % B
        Pm[r, b * S + t + 1] = 1.0
    Pm[T * B + 0, 0 * S] = 1.0
    Pm[T * B + 1, 1 * S] = 1.0

    # LSTM weights / bias with the g-gate columns pre-scaled by 2 (tanh via sigmoid trick);
    # PyTorch's separate b_ih / b_hh are summed here.
    def gscale(w):
        return jnp.concatenate([w[:, :2 * H], 2.0 * w[:, 2 * H:3 * H], w[:, 3 * H:]], axis=1)

    wih = gscale(p['lstm_wih'])
    whh = gscale(p['lstm_whh'])
    lb = gscale(p['lstm_bih'] + p['lstm_bhh'])

    wqkv = jnp.concatenate([p['enc_wq'], p['enc_wk'], p['enc_wv']], axis=1)   # (32,96)
    bqkv = jnp.concatenate([p['enc_bq'], p['enc_bk'], p['enc_bv']], axis=1)   # (1,96)

    wb = jnp.concatenate([
        pad128(jnp.asarray(Pm)),          # OFF_P    : 16 rows
        pad128(wqkv),                     # OFF_WQKV : 32
        pad128(p['enc_wo']),              # OFF_WO   : 32
        pad128(p['enc_wf1']),             # OFF_WF1  : 32
        pad128(p['enc_wf2']),             # OFF_WF2  : 128
        pad128(wih),                      # OFF_WIH  : 32
        pad128(whh),                      # OFF_WHH  : 32
        pad128(p['mha_wq']),              # OFF_MWQ  : 32
        pad128(p['mha_wk']),              # OFF_MWK  : 32
        pad128(p['mha_wv']),              # OFF_MWV  : 32
        pad128(p['mha_wo']),              # OFF_MWO  : 32
        pad128(p['mlp_w1'][:H]),          # OFF_W1A  : 32
        pad128(p['mlp_w1'][H:]),          # OFF_W1B  : 32
        pad128(p['mlp_w2']),              # OFF_W2   : 64
    ], axis=0).astype(bf16)
    assert wb.shape == (WB_ROWS, 128)

    head_id = np.arange(H) // DH
    seg = np.eye(NH, dtype=np.float32)[head_id]            # (32,4) lane -> head one-hot
    Rm = np.zeros((B, T * B), np.float32)
    for t in range(T):
        for b in range(B):
            Rm[b, t * B + b] = 1.0                         # sum over t within batch b

    bs = jnp.concatenate([
        pad128(bqkv), pad128(p['enc_bo']),
        pad128(p['enc_g1']), pad128(p['enc_be1']),
        pad128(p['enc_bf1']), pad128(p['enc_bf2']),
        pad128(p['enc_g2']), pad128(p['enc_be2']),
        pad128(lb),
        pad128(p['mha_bq']), pad128(p['mha_bk']),
        pad128(p['mha_bv']), pad128(p['mha_bo']),
        pad128(p['mlp_b1']), pad128(p['mlp_b2']),
        jnp.zeros((1, 128), f32),                          # pad -> NBIAS rows
        pad128(jnp.asarray(seg)),                          # OFF_SEG  : 32 rows
        pad128(jnp.asarray(seg.T), rows=8),                # OFF_SEGT : 8
        pad128(jnp.asarray(Rm), rows=8),                   # OFF_R    : 8
    ], axis=0).astype(f32)
    assert bs.shape == (BS_ROWS, 128)

    return {'emb_word': p['emb_word'], 'emb_pos': p['emb_pos'], 'wb': wb, 'bs': bs}


if __name__ == "__main__":
    key = jax.random.PRNGKey(0)
    pkey, ikey = jax.random.split(key)
    params = init_params(pkey)
    prep = prepare_params(params)

    input_ids = jax.random.randint(ikey, (B, S), 0, V, dtype=jnp.int32)
    attention_mask = jnp.ones((B, S), dtype=jnp.int32)

    fwd = jax.jit(lambda ids, m: xlmr_xnli_forward(prep, ids, m))
    out = fwd(input_ids, attention_mask)
    jax.block_until_ready(out)

    assert out.shape == (B, NCLS)
    # log_softmax rows must exponentiate-sum to 1
    assert bool(jnp.allclose(jnp.exp(out).sum(axis=1), 1.0, atol=1e-4))
    print("KERNEL_OK")
</pallas_src>

<mosaic_0001>
module attributes {stable_mosaic.version = 11 : i64} {
  func.func @fused_kernel(%arg0: memref<16x32xf32, #tpu.memory_space<vmem>>, %arg1: memref<16x16xf32, #tpu.memory_space<vmem>>, %arg2: memref<560x128xbf16, #tpu.memory_space<vmem>>, %arg3: memref<64x128xf32, #tpu.memory_space<vmem>>, %arg4: memref<2x3xf32, #tpu.memory_space<vmem>>) attributes {dimension_semantics = [], scalar_prefetch = 0 : i64, scratch_operands = 0 : i64, tpu.core_type = #tpu.core_type<tc>} {
    %c0 = arith.constant 0 : index
    %c0_0 = arith.constant 0 : index
    %0 = vector.load %arg0[%c0, %c0_0] : memref<16x32xf32, #tpu.memory_space<vmem>>, vector<16x32xf32>
    %1 = arith.truncf %0 : vector<16x32xf32> to vector<16x32xbf16>
    %c0_1 = arith.constant 0 : index
    %c0_2 = arith.constant 0 : index
    %2 = vector.load %arg1[%c0_1, %c0_2] : memref<16x16xf32, #tpu.memory_space<vmem>>, vector<16x16xf32>
    %c0_3 = arith.constant 0 : index
    %c0_4 = arith.constant 0 : index
    %3 = vector.load %arg2[%c0_3, %c0_4] : memref<560x128xbf16, #tpu.memory_space<vmem>>, vector<16x16xbf16>
    %c16 = arith.constant 16 : index
    %c0_5 = arith.constant 0 : index
    %4 = vector.load %arg2[%c16, %c0_5] : memref<560x128xbf16, #tpu.memory_space<vmem>>, vector<32x128xbf16>
    %c48 = arith.constant 48 : index
    %c0_6 = arith.constant 0 : index
    %5 = vector.load %arg2[%c48, %c0_6] : memref<560x128xbf16, #tpu.memory_space<vmem>>, vector<32x128xbf16>
    %c80 = arith.constant 80 : index
    %c0_7 = arith.constant 0 : index
    %6 = vector.load %arg2[%c80, %c0_7] : memref<560x128xbf16, #tpu.memory_space<vmem>>, vector<32x128xbf16>
    %c112 = arith.constant 112 : index
    %c0_8 = arith.constant 0 : index
    %7 = vector.load %arg2[%c112, %c0_8] : memref<560x128xbf16, #tpu.memory_space<vmem>>, vector<128x128xbf16>
    %c240 = arith.constant 240 : index
    %c0_9 = arith.constant 0 : index
    %8 = vector.load %arg2[%c240, %c0_9] : memref<560x128xbf16, #tpu.memory_space<vmem>>, vector<32x128xbf16>
    %c272 = arith.constant 272 : index
    %c0_10 = arith.constant 0 : index
    %9 = vector.load %arg2[%c272, %c0_10] : memref<560x128xbf16, #tpu.memory_space<vmem>>, vector<32x128xbf16>
    %c304 = arith.constant 304 : index
    %c0_11 = arith.constant 0 : index
    %10 = vector.load %arg2[%c304, %c0_11] : memref<560x128xbf16, #tpu.memory_space<vmem>>, vector<32x128xbf16>
    %c336 = arith.constant 336 : index
    %c0_12 = arith.constant 0 : index
    %11 = vector.load %arg2[%c336, %c0_12] : memref<560x128xbf16, #tpu.memory_space<vmem>>, vector<32x128xbf16>
    %c368 = arith.constant 368 : index
    %c0_13 = arith.constant 0 : index
    %12 = vector.load %arg2[%c368, %c0_13] : memref<560x128xbf16, #tpu.memory_space<vmem>>, vector<32x128xbf16>
    %c400 = arith.constant 400 : index
    %c0_14 = arith.constant 0 : index
    %13 = vector.load %arg2[%c400, %c0_14] : memref<560x128xbf16, #tpu.memory_space<vmem>>, vector<32x128xbf16>
    %c432 = arith.constant 432 : index
    %c0_15 = arith.constant 0 : index
    %14 = vector.load %arg2[%c432, %c0_15] : memref<560x128xbf16, #tpu.memory_space<vmem>>, vector<32x128xbf16>
    %c464 = arith.constant 464 : index
    %c0_16 = arith.constant 0 : index
    %15 = vector.load %arg2[%c464, %c0_16] : memref<560x128xbf16, #tpu.memory_space<vmem>>, vector<32x128xbf16>
    %c496 = arith.constant 496 : index
    %c0_17 = arith.constant 0 : index
    %16 = vector.load %arg2[%c496, %c0_17] : memref<560x128xbf16, #tpu.memory_space<vmem>>, vector<64x128xbf16>
    %c0_18 = arith.constant 0 : index
    %c0_19 = arith.constant 0 : index
    %17 = vector.load %arg3[%c0_18, %c0_19] : memref<64x128xf32, #tpu.memory_space<vmem>>, vector<16x128xf32>
    %18 = vector.extract_strided_slice %17 {offsets = [0, 0], sizes = [1, 128], strides = [1, 1]} : vector<16x128xf32> to vector<1x128xf32>
    %19 = vector.extract_strided_slice %17 {offsets = [1, 0], sizes = [1, 32], strides = [1, 1]} : vector<16x128xf32> to vector<1x32xf32>
    %20 = vector.extract_strided_slice %17 {offsets = [2, 0], sizes = [1, 32], strides = [1, 1]} : vector<16x128xf32> to vector<1x32xf32>
    %21 = vector.extract_strided_slice %17 {offsets = [3, 0], sizes = [1, 32], strides = [1, 1]} : vector<16x128xf32> to vector<1x32xf32>
    %22 = vector.extract_strided_slice %17 {offsets = [4, 0], sizes = [1, 128], strides = [1, 1]} : vector<16x128xf32> to vector<1x128xf32>
    %23 = vector.extract_strided_slice %17 {offsets = [5, 0], sizes = [1, 32], strides = [1, 1]} : vector<16x128xf32> to vector<1x32xf32>
    %24 = vector.extract_strided_slice %17 {offsets = [6, 0], sizes = [1, 32], strides = [1, 1]} : vector<16x128xf32> to vector<1x32xf32>
    %25 = vector.extract_strided_slice %17 {offsets = [7, 0], sizes = [1, 32], strides = [1, 1]} : vector<16x128xf32> to vector<1x32xf32>
    %26 = vector.extract_strided_slice %17 {offsets = [8, 0], sizes = [1, 128], strides = [1, 1]} : vector<16x128xf32> to vector<1x128xf32>
    %27 = vector.extract_strided_slice %17 {offsets = [9, 0], sizes = [1, 32], strides = [1, 1]} : vector<16x128xf32> to vector<1x32xf32>
    %28 = vector.extract_strided_slice %17 {offsets = [10, 0], sizes = [1, 32], strides = [1, 1]} : vector<16x128xf32> to vector<1x32xf32>
    %29 = vector.extract_strided_slice %17 {offsets = [11, 0], sizes = [1, 32], strides = [1, 1]} : vector<16x128xf32> to vector<1x32xf32>
    %30 = vector.extract_strided_slice %17 {offsets = [12, 0], sizes = [1, 32], strides = [1, 1]} : vector<16x128xf32> to vector<1x32xf32>
    %31 = vector.extract_strided_slice %17 {offsets = [13, 0], sizes = [1, 64], strides = [1, 1]} : vector<16x128xf32> to vector<1x64xf32>
    %32 = vector.extract_strided_slice %17 {offsets = [14, 0], sizes = [1, 3], strides = [1, 1]} : vector<16x128xf32> to vector<1x3xf32>
    %c16_20 = arith.constant 16 : index
    %c0_21 = arith.constant 0 : index
    %33 = vector.load %arg3[%c16_20, %c0_21] : memref<64x128xf32, #tpu.memory_space<vmem>>, vector<32x4xf32>
    %c48_22 = arith.constant 48 : index
    %c0_23 = arith.constant 0 : index
    %34 = vector.load %arg3[%c48_22, %c0_23] : memref<64x128xf32, #tpu.memory_space<vmem>>, vector<4x32xf32>
    %c56 = arith.constant 56 : index
    %c0_24 = arith.constant 0 : index
    %35 = vector.load %arg3[%c56, %c0_24] : memref<64x128xf32, #tpu.memory_space<vmem>>, vector<2x14xf32>
    %cst = arith.constant dense<0.000000e+00> : vector<16x128xf32>
    %36 = tpu.matmul %1, %4, %cst {dimension_numbers = #tpu.dot_dimension_numbers<[1], [0], [0], [1], [0, 0, 1, 1], [], []>} : vector<16x32xbf16>, vector<32x128xbf16>, vector<16x128xf32> -> vector<16x128xf32>
    %37 = vector.broadcast %18 : vector<1x128xf32> to vector<16x128xf32>
    %38 = arith.addf %36, %37 : vector<16x128xf32>
    %39 = arith.truncf %38 : vector<16x128xf32> to vector<16x128xbf16>
    %40 = vector.extract_strided_slice %39 {offsets = [0, 0], sizes = [16, 8], strides = [1, 1]} : vector<16x128xbf16> to vector<16x8xbf16>
    %41 = vector.extract_strided_slice %39 {offsets = [0, 32], sizes = [16, 8], strides = [1, 1]} : vector<16x128xbf16> to vector<16x8xbf16>
    %42 = vector.extract_strided_slice %39 {offsets = [0, 64], sizes = [16, 8], strides = [1, 1]} : vector<16x128xbf16> to vector<16x8xbf16>
    %cst_25 = arith.constant dense<0.000000e+00> : vector<16x16xf32>
    %43 = tpu.matmul %40, %41, %cst_25 {dimension_numbers = #tpu.dot_dimension_numbers<[1], [1], [0], [0], [0, 0, 1, 0], [], []>} : vector<16x8xbf16>, vector<16x8xbf16>, vector<16x16xf32> -> vector<16x16xf32>
    %cst_26 = arith.constant 0.353553385 : f32
    %44 = vector.broadcast %cst_26 : f32 to vector<16x16xf32>
    %45 = arith.mulf %43, %44 : vector<16x16xf32>
    %46 = arith.addf %45, %2 : vector<16x16xf32>
    %cst_27 = arith.constant dense<0xFF800000> : vector<16xf32>
    %47 = vector.multi_reduction <maximumf>, %46, %cst_27 [1] : vector<16x16xf32> to vector<16xf32>
    %48 = vector.shape_cast %47 : vector<16xf32> to vector<16x1xf32>
    %49 = vector.broadcast %48 : vector<16x1xf32> to vector<16x16xf32>
    %50 = arith.subf %46, %49 : vector<16x16xf32>
    %51 = math.exp %50 : vector<16x16xf32>
    %cst_28 = arith.constant dense<0.000000e+00> : vector<16xf32>
    %52 = vector.multi_reduction <add>, %51, %cst_28 [1] : vector<16x16xf32> to vector<16xf32>
    %53 = vector.shape_cast %52 : vector<16xf32> to vector<16x1xf32>
    %54 = tpu.reciprocal %53 {approx = true} : vector<16x1xf32> -> vector<16x1xf32>
    %55 = vector.broadcast %54 : vector<16x1xf32> to vector<16x16xf32>
    %56 = arith.mulf %51, %55 : vector<16x16xf32>
    %57 = arith.truncf %56 : vector<16x16xf32> to vector<16x16xbf16>
    %cst_29 = arith.constant dense<0.000000e+00> : vector<16x8xf32>
    %58 = tpu.matmul %57, %42, %cst_29 {dimension_numbers = #tpu.dot_dimension_numbers<[1], [0], [0], [1], [0, 0, 1, 1], [], []>} : vector<16x16xbf16>, vector<16x8xbf16>, vector<16x8xf32> -> vector<16x8xf32>
    %59 = vector.extract_strided_slice %39 {offsets = [0, 8], sizes = [16, 8], strides = [1, 1]} : vector<16x128xbf16> to vector<16x8xbf16>
    %60 = vector.extract_strided_slice %39 {offsets = [0, 40], sizes = [16, 8], strides = [1, 1]} : vector<16x128xbf16> to vector<16x8xbf16>
    %61 = vector.extract_strided_slice %39 {offsets = [0, 72], sizes = [16, 8], strides = [1, 1]} : vector<16x128xbf16> to vector<16x8xbf16>
    %cst_30 = arith.constant dense<0.000000e+00> : vector<16x16xf32>
    %62 = tpu.matmul %59, %60, %cst_30 {dimension_numbers = #tpu.dot_dimension_numbers<[1], [1], [0], [0], [0, 0, 1, 0], [], []>} : vector<16x8xbf16>, vector<16x8xbf16>, vector<16x16xf32> -> vector<16x16xf32>
    %cst_31 = arith.constant 0.353553385 : f32
    %63 = vector.broadcast %cst_31 : f32 to vector<16x16xf32>
    %64 = arith.mulf %62, %63 : vector<16x16xf32>
    %65 = arith.addf %64, %2 : vector<16x16xf32>
    %cst_32 = arith.constant dense<0xFF800000> : vector<16xf32>
    %66 = vector.multi_reduction <maximumf>, %65, %cst_32 [1] : vector<16x16xf32> to vector<16xf32>
    %67 = vector.shape_cast %66 : vector<16xf32> to vector<16x1xf32>
    %68 = vector.broadcast %67 : vector<16x1xf32> to vector<16x16xf32>
    %69 = arith.subf %65, %68 : vector<16x16xf32>
    %70 = math.exp %69 : vector<16x16xf32>
    %cst_33 = arith.constant dense<0.000000e+00> : vector<16xf32>
    %71 = vector.multi_reduction <add>, %70, %cst_33 [1] : vector<16x16xf32> to vector<16xf32>
    %72 = vector.shape_cast %71 : vector<16xf32> to vector<16x1xf32>
    %73 = tpu.reciprocal %72 {approx = true} : vector<16x1xf32> -> vector<16x1xf32>
    %74 = vector.broadcast %73 : vector<16x1xf32> to vector<16x16xf32>
    %75 = arith.mulf %70, %74 : vector<16x16xf32>
    %76 = arith.truncf %75 : vector<16x16xf32> to vector<16x16xbf16>
    %cst_34 = arith.constant dense<0.000000e+00> : vector<16x8xf32>
    %77 = tpu.matmul %76, %61, %cst_34 {dimension_numbers = #tpu.dot_dimension_numbers<[1], [0], [0], [1], [0, 0, 1, 1], [], []>} : vector<16x16xbf16>, vector<16x8xbf16>, vector<16x8xf32> -> vector<16x8xf32>
    %78 = vector.extract_strided_slice %39 {offsets = [0, 16], sizes = [16, 8], strides = [1, 1]} : vector<16x128xbf16> to vector<16x8xbf16>
    %79 = vector.extract_strided_slice %39 {offsets = [0, 48], sizes = [16, 8], strides = [1, 1]} : vector<16x128xbf16> to vector<16x8xbf16>
    %80 = vector.extract_strided_slice %39 {offsets = [0, 80], sizes = [16, 8], strides = [1, 1]} : vector<16x128xbf16> to vector<16x8xbf16>
    %cst_35 = arith.constant dense<0.000000e+00> : vector<16x16xf32>
    %81 = tpu.matmul %78, %79, %cst_35 {dimension_numbers = #tpu.dot_dimension_numbers<[1], [1], [0], [0], [0, 0, 1, 0], [], []>} : vector<16x8xbf16>, vector<16x8xbf16>, vector<16x16xf32> -> vector<16x16xf32>
    %cst_36 = arith.constant 0.353553385 : f32
    %82 = vector.broadcast %cst_36 : f32 to vector<16x16xf32>
    %83 = arith.mulf %81, %82 : vector<16x16xf32>
    %84 = arith.addf %83, %2 : vector<16x16xf32>
    %cst_37 = arith.constant dense<0xFF800000> : vector<16xf32>
    %85 = vector.multi_reduction <maximumf>, %84, %cst_37 [1] : vector<16x16xf32> to vector<16xf32>
    %86 = vector.shape_cast %85 : vector<16xf32> to vector<16x1xf32>
    %87 = vector.broadcast %86 : vector<16x1xf32> to vector<16x16xf32>
    %88 = arith.subf %84, %87 : vector<16x16xf32>
    %89 = math.exp %88 : vector<16x16xf32>
    %cst_38 = arith.constant dense<0.000000e+00> : vector<16xf32>
    %90 = vector.multi_reduction <add>, %89, %cst_38 [1] : vector<16x16xf32> to vector<16xf32>
    %91 = vector.shape_cast %90 : vector<16xf32> to vector<16x1xf32>
    %92 = tpu.reciprocal %91 {approx = true} : vector<16x1xf32> -> vector<16x1xf32>
    %93 = vector.broadcast %92 : vector<16x1xf32> to vector<16x16xf32>
    %94 = arith.mulf %89, %93 : vector<16x16xf32>
    %95 = arith.truncf %94 : vector<16x16xf32> to vector<16x16xbf16>
    %cst_39 = arith.constant dense<0.000000e+00> : vector<16x8xf32>
    %96 = tpu.matmul %95, %80, %cst_39 {dimension_numbers = #tpu.dot_dimension_numbers<[1], [0], [0], [1], [0, 0, 1, 1], [], []>} : vector<16x16xbf16>, vector<16x8xbf16>, vector<16x8xf32> -> vector<16x8xf32>
    %97 = vector.extract_strided_slice %39 {offsets = [0, 24], sizes = [16, 8], strides = [1, 1]} : vector<16x128xbf16> to vector<16x8xbf16>
    %98 = vector.extract_strided_slice %39 {offsets = [0, 56], sizes = [16, 8], strides = [1, 1]} : vector<16x128xbf16> to vector<16x8xbf16>
    %99 = vector.extract_strided_slice %39 {offsets = [0, 88], sizes = [16, 8], strides = [1, 1]} : vector<16x128xbf16> to vector<16x8xbf16>
    %cst_40 = arith.constant dense<0.000000e+00> : vector<16x16xf32>
    %100 = tpu.matmul %97, %98, %cst_40 {dimension_numbers = #tpu.dot_dimension_numbers<[1], [1], [0], [0], [0, 0, 1, 0], [], []>} : vector<16x8xbf16>, vector<16x8xbf16>, vector<16x16xf32> -> vector<16x16xf32>
    %cst_41 = arith.constant 0.353553385 : f32
    %101 = vector.broadcast %cst_41 : f32 to vector<16x16xf32>
    %102 = arith.mulf %100, %101 : vector<16x16xf32>
    %103 = arith.addf %102, %2 : vector<16x16xf32>
    %cst_42 = arith.constant dense<0xFF800000> : vector<16xf32>
    %104 = vector.multi_reduction <maximumf>, %103, %cst_42 [1] : vector<16x16xf32> to vector<16xf32>
    %105 = vector.shape_cast %104 : vector<16xf32> to vector<16x1xf32>
    %106 = vector.broadcast %105 : vector<16x1xf32> to vector<16x16xf32>
    %107 = arith.subf %103, %106 : vector<16x16xf32>
    %108 = math.exp %107 : vector<16x16xf32>
    %cst_43 = arith.constant dense<0.000000e+00> : vector<16xf32>
    %109 = vector.multi_reduction <add>, %108, %cst_43 [1] : vector<16x16xf32> to vector<16xf32>
    %110 = vector.shape_cast %109 : vector<16xf32> to vector<16x1xf32>
    %111 = tpu.reciprocal %110 {approx = true} : vector<16x1xf32> -> vector<16x1xf32>
    %112 = vector.broadcast %111 : vector<16x1xf32> to vector<16x16xf32>
    %113 = arith.mulf %108, %112 : vector<16x16xf32>
    %114 = arith.truncf %113 : vector<16x16xf32> to vector<16x16xbf16>
    %cst_44 = arith.constant dense<0.000000e+00> : vector<16x8xf32>
    %115 = tpu.matmul %114, %99, %cst_44 {dimension_numbers = #tpu.dot_dimension_numbers<[1], [0], [0], [1], [0, 0, 1, 1], [], []>} : vector<16x16xbf16>, vector<16x8xbf16>, vector<16x8xf32> -> vector<16x8xf32>
    %116 = tpu.concatenate %58, %77, %96, %115 in 1 : vector<16x8xf32>, vector<16x8xf32>, vector<16x8xf32>, vector<16x8xf32> -> vector<16x32xf32>
    %117 = arith.truncf %116 : vector<16x32xf32> to vector<16x32xbf16>
    %cst_45 = arith.constant dense<0.000000e+00> : vector<16x128xf32>
    %118 = tpu.matmul %117, %5, %cst_45 {dimension_numbers = #tpu.dot_dimension_numbers<[1], [0], [0], [1], [0, 0, 1, 1], [], []>} : vector<16x32xbf16>, vector<32x128xbf16>, vector<16x128xf32> -> vector<16x128xf32>
    %119 = vector.extract_strided_slice %118 {offsets = [0, 0], sizes = [16, 32], strides = [1, 1]} : vector<16x128xf32> to vector<16x32xf32>
    %120 = vector.broadcast %19 : vector<1x32xf32> to vector<16x32xf32>
    %121 = arith.addf %119, %120 : vector<16x32xf32>
    %122 = arith.addf %0, %121 : vector<16x32xf32>
    %cst_46 = arith.constant dense<0.000000e+00> : vector<16xf32>
    %123 = vector.multi_reduction <add>, %122, %cst_46 [1] : vector<16x32xf32> to vector<16xf32>
    %124 = vector.shape_cast %123 : vector<16xf32> to vector<16x1xf32>
    %cst_47 = arith.constant 3.200000e+01 : f32
    %125 = vector.broadcast %cst_47 : f32 to vector<16x1xf32>
    %126 = arith.divf %124, %125 : vector<16x1xf32>
    %127 = vector.broadcast %126 : vector<16x1xf32> to vector<16x32xf32>
    %128 = arith.subf %122, %127 : vector<16x32xf32>
    %129 = arith.mulf %128, %128 : vector<16x32xf32>
    %cst_48 = arith.constant dense<0.000000e+00> : vector<16xf32>
    %130 = vector.multi_reduction <add>, %129, %cst_48 [1] : vector<16x32xf32> to vector<16xf32>
    %131 = vector.shape_cast %130 : vector<16xf32> to vector<16x1xf32>
    %cst_49 = arith.constant 3.200000e+01 : f32
    %132 = vector.broadcast %cst_49 : f32 to vector<16x1xf32>
    %133 = arith.divf %131, %132 : vector<16x1xf32>
    %134 = vector.broadcast %126 : vector<16x1xf32> to vector<16x32xf32>
    %135 = arith.subf %122, %134 : vector<16x32xf32>
    %cst_50 = arith.constant 9.99999974E-6 : f32
    %136 = vector.broadcast %cst_50 : f32 to vector<16x1xf32>
    %137 = arith.addf %133, %136 : vector<16x1xf32>
    %138 = math.rsqrt %137 : vector<16x1xf32>
    %139 = vector.broadcast %138 : vector<16x1xf32> to vector<16x32xf32>
    %140 = arith.mulf %135, %139 : vector<16x32xf32>
    %141 = vector.broadcast %20 : vector<1x32xf32> to vector<16x32xf32>
    %142 = arith.mulf %140, %141 : vector<16x32xf32>
    %143 = vector.broadcast %21 : vector<1x32xf32> to vector<16x32xf32>
    %144 = arith.addf %142, %143 : vector<16x32xf32>
    %145 = arith.truncf %144 : vector<16x32xf32> to vector<16x32xbf16>
    %cst_51 = arith.constant dense<0.000000e+00> : vector<16x128xf32>
    %146 = tpu.matmul %145, %6, %cst_51 {dimension_numbers = #tpu.dot_dimension_numbers<[1], [0], [0], [1], [0, 0, 1, 1], [], []>} : vector<16x32xbf16>, vector<32x128xbf16>, vector<16x128xf32> -> vector<16x128xf32>
    %147 = vector.broadcast %22 : vector<1x128xf32> to vector<16x128xf32>
    %148 = arith.addf %146, %147 : vector<16x128xf32>
    %149 = arith.mulf %148, %148 : vector<16x128xf32>
    %150 = arith.mulf %148, %149 : vector<16x128xf32>
    %cst_52 = arith.constant 4.471500e-02 : f32
    %151 = vector.broadcast %cst_52 : f32 to vector<16x128xf32>
    %152 = arith.mulf %151, %150 : vector<16x128xf32>
    %153 = arith.addf %148, %152 : vector<16x128xf32>
    %cst_53 = arith.constant 0.797884583 : f32
    %154 = vector.broadcast %cst_53 : f32 to vector<16x128xf32>
    %155 = arith.mulf %154, %153 : vector<16x128xf32>
    %156 = math.tanh %155 : vector<16x128xf32>
    %cst_54 = arith.constant 1.000000e+00 : f32
    %157 = vector.broadcast %cst_54 : f32 to vector<16x128xf32>
    %158 = arith.addf %157, %156 : vector<16x128xf32>
    %cst_55 = arith.constant 5.000000e-01 : f32
    %159 = vector.broadcast %cst_55 : f32 to vector<16x128xf32>
    %160 = arith.mulf %159, %158 : vector<16x128xf32>
    %161 = arith.mulf %148, %160 : vector<16x128xf32>
    %162 = arith.truncf %161 : vector<16x128xf32> to vector<16x128xbf16>
    %cst_56 = arith.constant dense<0.000000e+00> : vector<16x128xf32>
    %163 = tpu.matmul %162, %7, %cst_56 {dimension_numbers = #tpu.dot_dimension_numbers<[1], [0], [0], [1], [0, 0, 1, 1], [], []>} : vector<16x128xbf16>, vector<128x128xbf16>, vector<16x128xf32> -> vector<16x128xf32>
    %164 = vector.extract_strided_slice %163 {offsets = [0, 0], sizes = [16, 32], strides = [1, 1]} : vector<16x128xf32> to vector<16x32xf32>
    %165 = vector.broadcast %23 : vector<1x32xf32> to vector<16x32xf32>
    %166 = arith.addf %164, %165 : vector<16x32xf32>
    %167 = arith.addf %144, %166 : vector<16x32xf32>
    %cst_57 = arith.constant dense<0.000000e+00> : vector<16xf32>
    %168 = vector.multi_reduction <add>, %167, %cst_57 [1] : vector<16x32xf32> to vector<16xf32>
    %169 = vector.shape_cast %168 : vector<16xf32> to vector<16x1xf32>
    %cst_58 = arith.constant 3.200000e+01 : f32
    %170 = vector.broadcast %cst_58 : f32 to vector<16x1xf32>
    %171 = arith.divf %169, %170 : vector<16x1xf32>
    %172 = vector.broadcast %171 : vector<16x1xf32> to vector<16x32xf32>
    %173 = arith.subf %167, %172 : vector<16x32xf32>
    %174 = arith.mulf %173, %173 : vector<16x32xf32>
    %cst_59 = arith.constant dense<0.000000e+00> : vector<16xf32>
    %175 = vector.multi_reduction <add>, %174, %cst_59 [1] : vector<16x32xf32> to vector<16xf32>
    %176 = vector.shape_cast %175 : vector<16xf32> to vector<16x1xf32>
    %cst_60 = arith.constant 3.200000e+01 : f32
    %177 = vector.broadcast %cst_60 : f32 to vector<16x1xf32>
    %178 = arith.divf %176, %177 : vector<16x1xf32>
    %179 = vector.broadcast %171 : vector<16x1xf32> to vector<16x32xf32>
    %180 = arith.subf %167, %179 : vector<16x32xf32>
    %cst_61 = arith.constant 9.99999974E-6 : f32
    %181 = vector.broadcast %cst_61 : f32 to vector<16x1xf32>
    %182 = arith.addf %178, %181 : vector<16x1xf32>
    %183 = math.rsqrt %182 : vector<16x1xf32>
    %184 = vector.broadcast %183 : vector<16x1xf32> to vector<16x32xf32>
    %185 = arith.mulf %180, %184 : vector<16x32xf32>
    %186 = vector.broadcast %24 : vector<1x32xf32> to vector<16x32xf32>
    %187 = arith.mulf %185, %186 : vector<16x32xf32>
    %188 = vector.broadcast %25 : vector<1x32xf32> to vector<16x32xf32>
    %189 = arith.addf %187, %188 : vector<16x32xf32>
    %190 = arith.truncf %189 : vector<16x32xf32> to vector<16x32xbf16>
    %cst_62 = arith.constant dense<0.000000e+00> : vector<16x32xf32>
    %191 = tpu.matmul %3, %190, %cst_62 {dimension_numbers = #tpu.dot_dimension_numbers<[1], [0], [0], [1], [0, 0, 1, 1], [], []>} : vector<16x16xbf16>, vector<16x32xbf16>, vector<16x32xf32> -> vector<16x32xf32>
    %192 = vector.extract_strided_slice %191 {offsets = [14, 0], sizes = [2, 32], strides = [1, 1]} : vector<16x32xf32> to vector<2x32xf32>
    %193 = arith.truncf %191 : vector<16x32xf32> to vector<16x32xbf16>
    %cst_63 = arith.constant dense<0.000000e+00> : vector<16x128xf32>
    %194 = tpu.matmul %193, %8, %cst_63 {dimension_numbers = #tpu.dot_dimension_numbers<[1], [0], [0], [1], [0, 0, 1, 1], [], []>} : vector<16x32xbf16>, vector<32x128xbf16>, vector<16x128xf32> -> vector<16x128xf32>
    %195 = vector.broadcast %26 : vector<1x128xf32> to vector<16x128xf32>
    %196 = arith.addf %194, %195 : vector<16x128xf32>
    %cst_64 = arith.constant 0.000000e+00 : f32
    %197 = vector.broadcast %cst_64 : f32 to vector<2x32xf32>
    %cst_65 = arith.constant 0.000000e+00 : f32
    %198 = vector.broadcast %cst_65 : f32 to vector<2x32xf32>
    %199 = vector.extract_strided_slice %196 {offsets = [0, 0], sizes = [2, 128], strides = [1, 1]} : vector<16x128xf32> to vector<2x128xf32>
    %200 = arith.truncf %197 : vector<2x32xf32> to vector<2x32xbf16>
    %cst_66 = arith.constant dense<0.000000e+00> : vector<2x128xf32>
    %201 = tpu.matmul %200, %9, %cst_66 {dimension_numbers = #tpu.dot_dimension_numbers<[1], [0], [0], [1], [0, 0, 1, 1], [], []>} : vector<2x32xbf16>, vector<32x128xbf16>, vector<2x128xf32> -> vector<2x128xf32>
    %202 = arith.addf %199, %201 : vector<2x128xf32>
    %203 = arith.negf %202 : vector<2x128xf32>
    %204 = math.exp %203 : vector<2x128xf32>
    %cst_67 = arith.constant 1.000000e+00 : f32
    %205 = vector.broadcast %cst_67 : f32 to vector<2x128xf32>
    %206 = arith.addf %205, %204 : vector<2x128xf32>
    %207 = arith.divf %205, %206 : vector<2x128xf32>
    %208 = vector.extract_strided_slice %207 {offsets = [0, 0], sizes = [2, 32], strides = [1, 1]} : vector<2x128xf32> to vector<2x32xf32>
    %209 = vector.extract_strided_slice %207 {offsets = [0, 32], sizes = [2, 32], strides = [1, 1]} : vector<2x128xf32> to vector<2x32xf32>
    %210 = vector.extract_strided_slice %207 {offsets = [0, 64], sizes = [2, 32], strides = [1, 1]} : vector<2x128xf32> to vector<2x32xf32>
    %cst_68 = arith.constant 2.000000e+00 : f32
    %211 = vector.broadcast %cst_68 : f32 to vector<2x32xf32>
    %212 = arith.mulf %211, %210 : vector<2x32xf32>
    %cst_69 = arith.constant 1.000000e+00 : f32
    %213 = vector.broadcast %cst_69 : f32 to vector<2x32xf32>
    %214 = arith.subf %212, %213 : vector<2x32xf32>
    %215 = vector.extract_strided_slice %207 {offsets = [0, 96], sizes = [2, 32], strides = [1, 1]} : vector<2x128xf32> to vector<2x32xf32>
    %216 = arith.mulf %209, %198 : vector<2x32xf32>
    %217 = arith.mulf %208, %214 : vector<2x32xf32>
    %218 = arith.addf %216, %217 : vector<2x32xf32>
    %219 = math.tanh %218 : vector<2x32xf32>
    %220 = arith.mulf %215, %219 : vector<2x32xf32>
    %221 = vector.extract_strided_slice %196 {offsets = [2, 0], sizes = [2, 128], strides = [1, 1]} : vector<16x128xf32> to vector<2x128xf32>
    %222 = arith.truncf %220 : vector<2x32xf32> to vector<2x32xbf16>
    %cst_70 = arith.constant dense<0.000000e+00> : vector<2x128xf32>
    %223 = tpu.matmul %222, %9, %cst_70 {dimension_numbers = #tpu.dot_dimension_numbers<[1], [0], [0], [1], [0, 0, 1, 1], [], []>} : vector<2x32xbf16>, vector<32x128xbf16>, vector<2x128xf32> -> vector<2x128xf32>
    %224 = arith.addf %221, %223 : vector<2x128xf32>
    %225 = arith.negf %224 : vector<2x128xf32>
    %226 = math.exp %225 : vector<2x128xf32>
    %cst_71 = arith.constant 1.000000e+00 : f32
    %227 = vector.broadcast %cst_71 : f32 to vector<2x128xf32>
    %228 = arith.addf %227, %226 : vector<2x128xf32>
    %229 = arith.divf %227, %228 : vector<2x128xf32>
    %230 = vector.extract_strided_slice %229 {offsets = [0, 0], sizes = [2, 32], strides = [1, 1]} : vector<2x128xf32> to vector<2x32xf32>
    %231 = vector.extract_strided_slice %229 {offsets = [0, 32], sizes = [2, 32], strides = [1, 1]} : vector<2x128xf32> to vector<2x32xf32>
    %232 = vector.extract_strided_slice %229 {offsets = [0, 64], sizes = [2, 32], strides = [1, 1]} : vector<2x128xf32> to vector<2x32xf32>
    %cst_72 = arith.constant 2.000000e+00 : f32
    %233 = vector.broadcast %cst_72 : f32 to vector<2x32xf32>
    %234 = arith.mulf %233, %232 : vector<2x32xf32>
    %cst_73 = arith.constant 1.000000e+00 : f32
    %235 = vector.broadcast %cst_73 : f32 to vector<2x32xf32>
    %236 = arith.subf %234, %235 : vector<2x32xf32>
    %237 = vector.extract_strided_slice %229 {offsets = [0, 96], sizes = [2, 32], strides = [1, 1]} : vector<2x128xf32> to vector<2x32xf32>
    %238 = arith.mulf %231, %218 : vector<2x32xf32>
    %239 = arith.mulf %230, %236 : vector<2x32xf32>
    %240 = arith.addf %238, %239 : vector<2x32xf32>
    %241 = math.tanh %240 : vector<2x32xf32>
    %242 = arith.mulf %237, %241 : vector<2x32xf32>
    %243 = vector.extract_strided_slice %196 {offsets = [4, 0], sizes = [2, 128], strides = [1, 1]} : vector<16x128xf32> to vector<2x128xf32>
    %244 = arith.truncf %242 : vector<2x32xf32> to vector<2x32xbf16>
    %cst_74 = arith.constant dense<0.000000e+00> : vector<2x128xf32>
    %245 = tpu.matmul %244, %9, %cst_74 {dimension_numbers = #tpu.dot_dimension_numbers<[1], [0], [0], [1], [0, 0, 1, 1], [], []>} : vector<2x32xbf16>, vector<32x128xbf16>, vector<2x128xf32> -> vector<2x128xf32>
    %246 = arith.addf %243, %245 : vector<2x128xf32>
    %247 = arith.negf %246 : vector<2x128xf32>
    %248 = math.exp %247 : vector<2x128xf32>
    %cst_75 = arith.constant 1.000000e+00 : f32
    %249 = vector.broadcast %cst_75 : f32 to vector<2x128xf32>
    %250 = arith.addf %249, %248 : vector<2x128xf32>
    %251 = arith.divf %249, %250 : vector<2x128xf32>
    %252 = vector.extract_strided_slice %251 {offsets = [0, 0], sizes = [2, 32], strides = [1, 1]} : vector<2x128xf32> to vector<2x32xf32>
    %253 = vector.extract_strided_slice %251 {offsets = [0, 32], sizes = [2, 32], strides = [1, 1]} : vector<2x128xf32> to vector<2x32xf32>
    %254 = vector.extract_strided_slice %251 {offsets = [0, 64], sizes = [2, 32], strides = [1, 1]} : vector<2x128xf32> to vector<2x32xf32>
    %cst_76 = arith.constant 2.000000e+00 : f32
    %255 = vector.broadcast %cst_76 : f32 to vector<2x32xf32>
    %256 = arith.mulf %255, %254 : vector<2x32xf32>
    %cst_77 = arith.constant 1.000000e+00 : f32
    %257 = vector.broadcast %cst_77 : f32 to vector<2x32xf32>
    %258 = arith.subf %256, %257 : vector<2x32xf32>
    %259 = vector.extract_strided_slice %251 {offsets = [0, 96], sizes = [2, 32], strides = [1, 1]} : vector<2x128xf32> to vector<2x32xf32>
    %260 = arith.mulf %253, %240 : vector<2x32xf32>
    %261 = arith.mulf %252, %258 : vector<2x32xf32>
    %262 = arith.addf %260, %261 : vector<2x32xf32>
    %263 = math.tanh %262 : vector<2x32xf32>
    %264 = arith.mulf %259, %263 : vector<2x32xf32>
    %265 = vector.extract_strided_slice %196 {offsets = [6, 0], sizes = [2, 128], strides = [1, 1]} : vector<16x128xf32> to vector<2x128xf32>
    %266 = arith.truncf %264 : vector<2x32xf32> to vector<2x32xbf16>
    %cst_78 = arith.constant dense<0.000000e+00> : vector<2x128xf32>
    %267 = tpu.matmul %266, %9, %cst_78 {dimension_numbers = #tpu.dot_dimension_numbers<[1], [0], [0], [1], [0, 0, 1, 1], [], []>} : vector<2x32xbf16>, vector<32x128xbf16>, vector<2x128xf32> -> vector<2x128xf32>
    %268 = arith.addf %265, %267 : vector<2x128xf32>
    %269 = arith.negf %268 : vector<2x128xf32>
    %270 = math.exp %269 : vector<2x128xf32>
    %cst_79 = arith.constant 1.000000e+00 : f32
    %271 = vector.broadcast %cst_79 : f32 to vector<2x128xf32>
    %272 = arith.addf %271, %270 : vector<2x128xf32>
    %273 = arith.divf %271, %272 : vector<2x128xf32>
    %274 = vector.extract_strided_slice %273 {offsets = [0, 0], sizes = [2, 32], strides = [1, 1]} : vector<2x128xf32> to vector<2x32xf32>
    %275 = vector.extract_strided_slice %273 {offsets = [0, 32], sizes = [2, 32], strides = [1, 1]} : vector<2x128xf32> to vector<2x32xf32>
    %276 = vector.extract_strided_slice %273 {offsets = [0, 64], sizes = [2, 32], strides = [1, 1]} : vector<2x128xf32> to vector<2x32xf32>
    %cst_80 = arith.constant 2.000000e+00 : f32
    %277 = vector.broadcast %cst_80 : f32 to vector<2x32xf32>
    %278 = arith.mulf %277, %276 : vector<2x32xf32>
    %cst_81 = arith.constant 1.000000e+00 : f32
    %279 = vector.broadcast %cst_81 : f32 to vector<2x32xf32>
    %280 = arith.subf %278, %279 : vector<2x32xf32>
    %281 = vector.extract_strided_slice %273 {offsets = [0, 96], sizes = [2, 32], strides = [1, 1]} : vector<2x128xf32> to vector<2x32xf32>
    %282 = arith.mulf %275, %262 : vector<2x32xf32>
    %283 = arith.mulf %274, %280 : vector<2x32xf32>
    %284 = arith.addf %282, %283 : vector<2x32xf32>
    %285 = math.tanh %284 : vector<2x32xf32>
    %286 = arith.mulf %281, %285 : vector<2x32xf32>
    %287 = vector.extract_strided_slice %196 {offsets = [8, 0], sizes = [2, 128], strides = [1, 1]} : vector<16x128xf32> to vector<2x128xf32>
    %288 = arith.truncf %286 : vector<2x32xf32> to vector<2x32xbf16>
    %cst_82 = arith.constant dense<0.000000e+00> : vector<2x128xf32>
    %289 = tpu.matmul %288, %9, %cst_82 {dimension_numbers = #tpu.dot_dimension_numbers<[1], [0], [0], [1], [0, 0, 1, 1], [], []>} : vector<2x32xbf16>, vector<32x128xbf16>, vector<2x128xf32> -> vector<2x128xf32>
    %290 = arith.addf %287, %289 : vector<2x128xf32>
    %291 = arith.negf %290 : vector<2x128xf32>
    %292 = math.exp %291 : vector<2x128xf32>
    %cst_83 = arith.constant 1.000000e+00 : f32
    %293 = vector.broadcast %cst_83 : f32 to vector<2x128xf32>
    %294 = arith.addf %293, %292 : vector<2x128xf32>
    %295 = arith.divf %293, %294 : vector<2x128xf32>
    %296 = vector.extract_strided_slice %295 {offsets = [0, 0], sizes = [2, 32], strides = [1, 1]} : vector<2x128xf32> to vector<2x32xf32>
    %297 = vector.extract_strided_slice %295 {offsets = [0, 32], sizes = [2, 32], strides = [1, 1]} : vector<2x128xf32> to vector<2x32xf32>
    %298 = vector.extract_strided_slice %295 {offsets = [0, 64], sizes = [2, 32], strides = [1, 1]} : vector<2x128xf32> to vector<2x32xf32>
    %cst_84 = arith.constant 2.000000e+00 : f32
    %299 = vector.broadcast %cst_84 : f32 to vector<2x32xf32>
    %300 = arith.mulf %299, %298 : vector<2x32xf32>
    %cst_85 = arith.constant 1.000000e+00 : f32
    %301 = vector.broadcast %cst_85 : f32 to vector<2x32xf32>
    %302 = arith.subf %300, %301 : vector<2x32xf32>
    %303 = vector.extract_strided_slice %295 {offsets = [0, 96], sizes = [2, 32], strides = [1, 1]} : vector<2x128xf32> to vector<2x32xf32>
    %304 = arith.mulf %297, %284 : vector<2x32xf32>
    %305 = arith.mulf %296, %302 : vector<2x32xf32>
    %306 = arith.addf %304, %305 : vector<2x32xf32>
    %307 = math.tanh %306 : vector<2x32xf32>
    %308 = arith.mulf %303, %307 : vector<2x32xf32>
    %309 = vector.extract_strided_slice %196 {offsets = [10, 0], sizes = [2, 128], strides = [1, 1]} : vector<16x128xf32> to vector<2x128xf32>
    %310 = arith.truncf %308 : vector<2x32xf32> to vector<2x32xbf16>
    %cst_86 = arith.constant dense<0.000000e+00> : vector<2x128xf32>
    %311 = tpu.matmul %310, %9, %cst_86 {dimension_numbers = #tpu.dot_dimension_numbers<[1], [0], [0], [1], [0, 0, 1, 1], [], []>} : vector<2x32xbf16>, vector<32x128xbf16>, vector<2x128xf32> -> vector<2x128xf32>
    %312 = arith.addf %309, %311 : vector<2x128xf32>
    %313 = arith.negf %312 : vector<2x128xf32>
    %314 = math.exp %313 : vector<2x128xf32>
    %cst_87 = arith.constant 1.000000e+00 : f32
    %315 = vector.broadcast %cst_87 : f32 to vector<2x128xf32>
    %316 = arith.addf %315, %314 : vector<2x128xf32>
    %317 = arith.divf %315, %316 : vector<2x128xf32>
    %318 = vector.extract_strided_slice %317 {offsets = [0, 0], sizes = [2, 32], strides = [1, 1]} : vector<2x128xf32> to vector<2x32xf32>
    %319 = vector.extract_strided_slice %317 {offsets = [0, 32], sizes = [2, 32], strides = [1, 1]} : vector<2x128xf32> to vector<2x32xf32>
    %320 = vector.extract_strided_slice %317 {offsets = [0, 64], sizes = [2, 32], strides = [1, 1]} : vector<2x128xf32> to vector<2x32xf32>
    %cst_88 = arith.constant 2.000000e+00 : f32
    %321 = vector.broadcast %cst_88 : f32 to vector<2x32xf32>
    %322 = arith.mulf %321, %320 : vector<2x32xf32>
    %cst_89 = arith.constant 1.000000e+00 : f32
    %323 = vector.broadcast %cst_89 : f32 to vector<2x32xf32>
    %324 = arith.subf %322, %323 : vector<2x32xf32>
    %325 = vector.extract_strided_slice %317 {offsets = [0, 96], sizes = [2, 32], strides = [1, 1]} : vector<2x128xf32> to vector<2x32xf32>
    %326 = arith.mulf %319, %306 : vector<2x32xf32>
    %327 = arith.mulf %318, %324 : vector<2x32xf32>
    %328 = arith.addf %326, %327 : vector<2x32xf32>
    %329 = math.tanh %328 : vector<2x32xf32>
    %330 = arith.mulf %325, %329 : vector<2x32xf32>
    %331 = vector.extract_strided_slice %196 {offsets = [12, 0], sizes = [2, 128], strides = [1, 1]} : vector<16x128xf32> to vector<2x128xf32>
    %332 = arith.truncf %330 : vector<2x32xf32> to vector<2x32xbf16>
    %cst_90 = arith.constant dense<0.000000e+00> : vector<2x128xf32>
    %333 = tpu.matmul %332, %9, %cst_90 {dimension_numbers = #tpu.dot_dimension_numbers<[1], [0], [0], [1], [0, 0, 1, 1], [], []>} : vector<2x32xbf16>, vector<32x128xbf16>, vector<2x128xf32> -> vector<2x128xf32>
    %334 = arith.addf %331, %333 : vector<2x128xf32>
    %335 = arith.negf %334 : vector<2x128xf32>
    %336 = math.exp %335 : vector<2x128xf32>
    %cst_91 = arith.constant 1.000000e+00 : f32
    %337 = vector.broadcast %cst_91 : f32 to vector<2x128xf32>
    %338 = arith.addf %337, %336 : vector<2x128xf32>
    %339 = arith.divf %337, %338 : vector<2x128xf32>
    %340 = vector.extract_strided_slice %339 {offsets = [0, 0], sizes = [2, 32], strides = [1, 1]} : vector<2x128xf32> to vector<2x32xf32>
    %341 = vector.extract_strided_slice %339 {offsets = [0, 32], sizes = [2, 32], strides = [1, 1]} : vector<2x128xf32> to vector<2x32xf32>
    %342 = vector.extract_strided_slice %339 {offsets = [0, 64], sizes = [2, 32], strides = [1, 1]} : vector<2x128xf32> to vector<2x32xf32>
    %cst_92 = arith.constant 2.000000e+00 : f32
    %343 = vector.broadcast %cst_92 : f32 to vector<2x32xf32>
    %344 = arith.mulf %343, %342 : vector<2x32xf32>
    %cst_93 = arith.constant 1.000000e+00 : f32
    %345 = vector.broadcast %cst_93 : f32 to vector<2x32xf32>
    %346 = arith.subf %344, %345 : vector<2x32xf32>
    %347 = vector.extract_strided_slice %339 {offsets = [0, 96], sizes = [2, 32], strides = [1, 1]} : vector<2x128xf32> to vector<2x32xf32>
    %348 = arith.mulf %341, %328 : vector<2x32xf32>
    %349 = arith.mulf %340, %346 : vector<2x32xf32>
    %350 = arith.addf %348, %349 : vector<2x32xf32>
    %351 = math.tanh %350 : vector<2x32xf32>
    %352 = arith.mulf %347, %351 : vector<2x32xf32>
    %353 = tpu.concatenate %220, %242, %264, %286, %308, %330, %352 in 0 : vector<2x32xf32>, vector<2x32xf32>, vector<2x32xf32>, vector<2x32xf32>, vector<2x32xf32>, vector<2x32xf32>, vector<2x32xf32> -> vector<14x32xf32>
    %354 = arith.truncf %353 : vector<14x32xf32> to vector<14x32xbf16>
    %355 = arith.truncf %192 : vector<2x32xf32> to vector<2x32xbf16>
    %cst_94 = arith.constant dense<0.000000e+00> : vector<2x128xf32>
    %356 = tpu.matmul %355, %10, %cst_94 {dimension_numbers = #tpu.dot_dimension_numbers<[1], [0], [0], [1], [0, 0, 1, 1], [], []>} : vector<2x32xbf16>, vector<32x128xbf16>, vector<2x128xf32> -> vector<2x128xf32>
    %357 = vector.extract_strided_slice %356 {offsets = [0, 0], sizes = [2, 32], strides = [1, 1]} : vector<2x128xf32> to vector<2x32xf32>
    %358 = vector.broadcast %27 : vector<1x32xf32> to vector<2x32xf32>
    %359 = arith.addf %357, %358 : vector<2x32xf32>
    %cst_95 = arith.constant dense<0.000000e+00> : vector<14x128xf32>
    %360 = tpu.matmul %354, %11, %cst_95 {dimension_numbers = #tpu.dot_dimension_numbers<[1], [0], [0], [1], [0, 0, 1, 1], [], []>} : vector<14x32xbf16>, vector<32x128xbf16>, vector<14x128xf32> -> vector<14x128xf32>
    %361 = vector.extract_strided_slice %360 {offsets = [0, 0], sizes = [14, 32], strides = [1, 1]} : vector<14x128xf32> to vector<14x32xf32>
    %362 = vector.broadcast %28 : vector<1x32xf32> to vector<14x32xf32>
    %363 = arith.addf %361, %362 : vector<14x32xf32>
    %cst_96 = arith.constant dense<0.000000e+00> : vector<14x128xf32>
    %364 = tpu.matmul %354, %12, %cst_96 {dimension_numbers = #tpu.dot_dimension_numbers<[1], [0], [0], [1], [0, 0, 1, 1], [], []>} : vector<14x32xbf16>, vector<32x128xbf16>, vector<14x128xf32> -> vector<14x128xf32>
    %365 = vector.extract_strided_slice %364 {offsets = [0, 0], sizes = [14, 32], strides = [1, 1]} : vector<14x128xf32> to vector<14x32xf32>
    %366 = vector.broadcast %29 : vector<1x32xf32> to vector<14x32xf32>
    %367 = arith.addf %365, %366 : vector<14x32xf32>
    %368 = tpu.concatenate %359, %359, %359, %359, %359, %359, %359 in 0 : vector<2x32xf32>, vector<2x32xf32>, vector<2x32xf32>, vector<2x32xf32>, vector<2x32xf32>, vector<2x32xf32>, vector<2x32xf32> -> vector<14x32xf32>
    %369 = arith.mulf %368, %363 : vector<14x32xf32>
    %cst_97 = arith.constant dense<0.000000e+00> : vector<14x4xf32>
    %370 = tpu.matmul %369, %33, %cst_97 {dimension_numbers = #tpu.dot_dimension_numbers<[1], [0], [0], [1], [0, 0, 1, 1], [], []>} : vector<14x32xf32>, vector<32x4xf32>, vector<14x4xf32> -> vector<14x4xf32>
    %cst_98 = arith.constant 0.353553385 : f32
    %371 = vector.broadcast %cst_98 : f32 to vector<14x4xf32>
    %372 = arith.mulf %370, %371 : vector<14x4xf32>
    %cst_99 = arith.constant dense<0xFF800000> : vector<14xf32>
    %373 = vector.multi_reduction <maximumf>, %372, %cst_99 [1] : vector<14x4xf32> to vector<14xf32>
    %374 = vector.shape_cast %373 : vector<14xf32> to vector<14x1xf32>
    %cst_100 = arith.constant dense<0xFF800000> : vector<1xf32>
    %375 = vector.multi_reduction <maximumf>, %374, %cst_100 [0] : vector<14x1xf32> to vector<1xf32>
    %376 = vector.shape_cast %375 : vector<1xf32> to vector<1x1xf32>
    %377 = vector.broadcast %376 : vector<1x1xf32> to vector<14x4xf32>
    %378 = arith.subf %372, %377 : vector<14x4xf32>
    %379 = math.exp %378 : vector<14x4xf32>
    %cst_101 = arith.constant dense<0.000000e+00> : vector<2x4xf32>
    %380 = tpu.matmul %35, %379, %cst_101 {dimension_numbers = #tpu.dot_dimension_numbers<[1], [0], [0], [1], [0, 0, 1, 1], [], []>} : vector<2x14xf32>, vector<14x4xf32>, vector<2x4xf32> -> vector<2x4xf32>
    %381 = tpu.reciprocal %380 {approx = true} : vector<2x4xf32> -> vector<2x4xf32>
    %382 = tpu.concatenate %381, %381, %381, %381, %381, %381, %381 in 0 : vector<2x4xf32>, vector<2x4xf32>, vector<2x4xf32>, vector<2x4xf32>, vector<2x4xf32>, vector<2x4xf32>, vector<2x4xf32> -> vector<14x4xf32>
    %383 = arith.mulf %379, %382 : vector<14x4xf32>
    %cst_102 = arith.constant dense<0.000000e+00> : vector<14x32xf32>
    %384 = tpu.matmul %383, %34, %cst_102 {dimension_numbers = #tpu.dot_dimension_numbers<[1], [0], [0], [1], [0, 0, 1, 1], [], []>} : vector<14x4xf32>, vector<4x32xf32>, vector<14x32xf32> -> vector<14x32xf32>
    %385 = arith.mulf %384, %367 : vector<14x32xf32>
    %cst_103 = arith.constant dense<0.000000e+00> : vector<2x32xf32>
    %386 = tpu.matmul %35, %385, %cst_103 {dimension_numbers = #tpu.dot_dimension_numbers<[1], [0], [0], [1], [0, 0, 1, 1], [], []>} : vector<2x14xf32>, vector<14x32xf32>, vector<2x32xf32> -> vector<2x32xf32>
    %387 = arith.truncf %386 : vector<2x32xf32> to vector<2x32xbf16>
    %cst_104 = arith.constant dense<0.000000e+00> : vector<2x128xf32>
    %388 = tpu.matmul %387, %13, %cst_104 {dimension_numbers = #tpu.dot_dimension_numbers<[1], [0], [0], [1], [0, 0, 1, 1], [], []>} : vector<2x32xbf16>, vector<32x128xbf16>, vector<2x128xf32> -> vector<2x128xf32>
    %389 = vector.extract_strided_slice %388 {offsets = [0, 0], sizes = [2, 32], strides = [1, 1]} : vector<2x128xf32> to vector<2x32xf32>
    %390 = vector.broadcast %30 : vector<1x32xf32> to vector<2x32xf32>
    %391 = arith.addf %389, %390 : vector<2x32xf32>
    %cst_105 = arith.constant dense<0.000000e+00> : vector<2x128xf32>
    %392 = tpu.matmul %355, %14, %cst_105 {dimension_numbers = #tpu.dot_dimension_numbers<[1], [0], [0], [1], [0, 0, 1, 1], [], []>} : vector<2x32xbf16>, vector<32x128xbf16>, vector<2x128xf32> -> vector<2x128xf32>
    %393 = vector.extract_strided_slice %392 {offsets = [0, 0], sizes = [2, 64], strides = [1, 1]} : vector<2x128xf32> to vector<2x64xf32>
    %394 = arith.truncf %391 : vector<2x32xf32> to vector<2x32xbf16>
    %cst_106 = arith.constant dense<0.000000e+00> : vector<2x128xf32>
    %395 = tpu.matmul %394, %15, %cst_106 {dimension_numbers = #tpu.dot_dimension_numbers<[1], [0], [0], [1], [0, 0, 1, 1], [], []>} : vector<2x32xbf16>, vector<32x128xbf16>, vector<2x128xf32> -> vector<2x128xf32>
    %396 = vector.extract_strided_slice %395 {offsets = [0, 0], sizes = [2, 64], strides = [1, 1]} : vector<2x128xf32> to vector<2x64xf32>
    %397 = arith.addf %393, %396 : vector<2x64xf32>
    %398 = vector.broadcast %31 : vector<1x64xf32> to vector<2x64xf32>
    %399 = arith.addf %397, %398 : vector<2x64xf32>
    %cst_107 = arith.constant 0.000000e+00 : f32
    %400 = vector.broadcast %cst_107 : f32 to vector<2x64xf32>
    %401 = arith.maximumf %399, %400 : vector<2x64xf32>
    %402 = arith.truncf %401 : vector<2x64xf32> to vector<2x64xbf16>
    %cst_108 = arith.constant dense<0.000000e+00> : vector<2x128xf32>
    %403 = tpu.matmul %402, %16, %cst_108 {dimension_numbers = #tpu.dot_dimension_numbers<[1], [0], [0], [1], [0, 0, 1, 1], [], []>} : vector<2x64xbf16>, vector<64x128xbf16>, vector<2x128xf32> -> vector<2x128xf32>
    %404 = vector.extract_strided_slice %403 {offsets = [0, 0], sizes = [2, 3], strides = [1, 1]} : vector<2x128xf32> to vector<2x3xf32>
    %405 = vector.broadcast %32 : vector<1x3xf32> to vector<2x3xf32>
    %406 = arith.addf %404, %405 : vector<2x3xf32>
    %cst_109 = arith.constant dense<0xFF800000> : vector<2xf32>
    %407 = vector.multi_reduction <maximumf>, %406, %cst_109 [1] : vector<2x3xf32> to vector<2xf32>
    %408 = vector.shape_cast %407 : vector<2xf32> to vector<2x1xf32>
    %409 = vector.broadcast %408 : vector<2x1xf32> to vector<2x3xf32>
    %410 = arith.subf %406, %409 : vector<2x3xf32>
    %411 = math.exp %410 : vector<2x3xf32>
    %cst_110 = arith.constant dense<0.000000e+00> : vector<2xf32>
    %412 = vector.multi_reduction <add>, %411, %cst_110 [1] : vector<2x3xf32> to vector<2xf32>
    %413 = vector.shape_cast %412 : vector<2xf32> to vector<2x1xf32>
    %414 = math.log %413 : vector<2x1xf32>
    %415 = arith.addf %408, %414 : vector<2x1xf32>
    %416 = vector.broadcast %415 : vector<2x1xf32> to vector<2x3xf32>
    %417 = arith.subf %406, %416 : vector<2x3xf32>
    %c0_111 = arith.constant 0 : index
    %c0_112 = arith.constant 0 : index
    %418 = vector.load %arg4[%c0_111, %c0_112] : memref<2x3xf32, #tpu.memory_space<vmem>>, vector<2x3xf32>
    tpu.vector_store %arg4[%c0_111, %c0_112], %417 {strides = array<i32>} : memref<2x3xf32, #tpu.memory_space<vmem>>, vector<2x3xf32>,
    return
  }
}

</mosaic_0001>

<llo_original>
// kernel: _lambda_.1
$region0: #{_lambda_.1}
  #allocation0 [shape = 'u32[]', space=smem, size = 0x4, offset = 0x4, fixed_abs, tag = 'smem constant byte address 0x4 - core index']
  #allocation1 [shape = 'u32[72,128]{1,0:T(1,128)}', space=vmem, size = 0x9000, scoped, tag = 'internal scratch']
  %s0 = inlined_call_operand.vmem [shape: f32[16,32], index: 0, kind: input, shape index: {}]
  %s1 = inlined_call_operand.vmem [shape: f32[16,16], index: 1, kind: input, shape index: {}]
  %s2 = inlined_call_operand.hbm [shape: bf16[560,128], index: 2, kind: input, shape index: {}]
  %s3 = inlined_call_operand.vmem [shape: f32[64,128], index: 3, kind: input, shape index: {}]
  %s4 = inlined_call_operand.hbm [shape: f32[2,3], index: 4, kind: output, shape index: {}]
  %s5 = sld [smem:[#allocation0]]
  $region30: #{_lambda_.1} parent=0
    _
  %s7 = ssub.s32 1, %s5
  %s8 = scalar_select 0, %s7, %s5
  $region1: #{_lambda_.1} parent=0
    #allocation2 [shape = 'u8[143360]{0}', space=vmem, size = 0x23000, scoped, tag = 'input window, operand 2, single buffered']
    #allocation3 [shape = 's32[1]{0}', space=sflag, size = 0x4, scoped, tag = 'scoped memory for _lambda_.1']
    #allocation4 [shape = 's32[1]{0}', space=sflag, size = 0x4, scoped, tag = 'scoped memory for _lambda_.1']
    #allocation5 [shape = 'u8[1024]{0}', space=vmem, size = 0x400, scoped, tag = 'output window, operand 0, single buffered']
    %9 = vsyncpa [#allocation3], 0
    %10 = vsyncpa [#allocation4], 0
    // Predicated region
    $region2: #{_lambda_.1} parent=1 // pred_check
      _
    $region3: #{_lambda_.1} parent=1 // pred_check_branch
      %12 = sbr.rel (0) target = $region5
    $region4: #{_lambda_.1} parent=1 // pred_region
      _
    $region5: #{_lambda_.1} parent=1 // pred_fallthru
      _
    // Predicated region
    $region6: #{_lambda_.1} parent=1 // pred_check
      _
    $region7: #{_lambda_.1} parent=1 // pred_check_branch
      %14 = sbr.rel (0) target = $region9
    $region8: #{_lambda_.1} parent=1 // pred_region
      _
    $region9: #{_lambda_.1} parent=1 // pred_fallthru
      _
    // Predicated region
    $region10: #{_lambda_.1} parent=1 // pred_check
      _
    $region11: #{_lambda_.1} parent=1 // pred_check_branch
      %16 = sbr.rel (0) target = $region13
    $region12: #{_lambda_.1} parent=1 // pred_region
      %18 = vsyncadd [#allocation3], 0
      %s19 = sshll.u32 %s2, 4
      %s20 = int_to_ptr.hbm [resolvable:$true] %s19
      %s21 = sshll.u32 [#allocation2], 4
      %s22 = int_to_ptr.vmem [resolvable:$true] %s21
      %27 = dma.hbm_to_vmem [thread:$0]  %s20, 4480, %s22, [#allocation3], 64, 64, 4
    $region13: #{_lambda_.1} parent=1 // pred_fallthru
      _
    // Predicated region
    $region14: #{_lambda_.1} parent=1 // pred_check
      _
    $region15: #{_lambda_.1} parent=1 // pred_check_branch
      %29 = sbr.rel (0) target = $region17
    $region16: #{_lambda_.1} parent=1 // pred_region
      _
    $region17: #{_lambda_.1} parent=1 // pred_fallthru
      _
    // Predicated region
    $region18: #{_lambda_.1} parent=1 // pred_check
      _
    $region19: #{_lambda_.1} parent=1 // pred_check_branch
      %31 = sbr.rel (0) target = $region21
    $region20: #{_lambda_.1} parent=1 // pred_region
      %33 = dma.done [#allocation3], 4480
    $region21: #{_lambda_.1} parent=1 // pred_fallthru
      _
    %v35 = vld [vmem:[%s0] sm:$0xff]
    %v36 = vld [vmem:[%s0 + $0x8] sm:$0xff]
    %v37 = vpack.c.bf16 %v36, %v35
    %v38 = vld [vmem:[%s1] sm:$0xff]
    %v39 = vld [vmem:[%s1 + $0x8] sm:$0xff]
    %v40 = vld [vmem:[#allocation2] sm:$0xf]
    %v41 = vld [vmem:[#allocation2 + $0x4] sm:$0xf]
    %v42 = vld [vmem:[#allocation2 + $0x8] sm:$0xf]
    %v43 = vld [vmem:[#allocation2 + $0xc] sm:$0xf]
    %v44 = vld [vmem:[#allocation2 + $0x10] sm:$0xf]
    %v45 = vld [vmem:[#allocation2 + $0x14] sm:$0xf]
    %v46 = vld [vmem:[#allocation2 + $0x18] sm:$0xf]
    %v47 = vld [vmem:[#allocation2 + $0x1c] sm:$0xf]
    %v48 = vld [vmem:[#allocation2 + $0x20] sm:$0xf]
    %v49 = vld [vmem:[#allocation2 + $0x24] sm:$0xf]
    %v50 = vld [vmem:[#allocation2 + $0x28] sm:$0xf]
    %v51 = vld [vmem:[#allocation2 + $0x2c] sm:$0xf]
    %v52 = vld [vmem:[#allocation2 + $0x30] sm:$0xf]
    %v53 = vld [vmem:[#allocation2 + $0x34] sm:$0xf]
    %v54 = vld [vmem:[#allocation2 + $0x38] sm:$0xf]
    %v55 = vld [vmem:[#allocation2 + $0x3c] sm:$0xf]
    %v56 = vld [vmem:[#allocation2 + $0x40] sm:$0xf]
    %v57 = vld [vmem:[#allocation2 + $0x44] sm:$0xf]
    %v58 = vld [vmem:[#allocation2 + $0x48] sm:$0xf]
    %v59 = vld [vmem:[#allocation2 + $0x4c] sm:$0xf]
    %v60 = vld [vmem:[#allocation2 + $0x50] sm:$0xf]
    %v61 = vld [vmem:[#allocation2 + $0x54] sm:$0xf]
    %v62 = vld [vmem:[#allocation2 + $0x58] sm:$0xf]
    %v63 = vld [vmem:[#allocation2 + $0x5c] sm:$0xf]
    %v64 = vld [vmem:[#allocation2 + $0x60] sm:$0xf]
    %v65 = vld [vmem:[#allocation2 + $0x64] sm:$0xf]
    %v66 = vld [vmem:[#allocation2 + $0x68] sm:$0xf]
    %v67 = vld [vmem:[#allocation2 + $0x6c] sm:$0xf]
    %v68 = vld [vmem:[#allocation2 + $0x70] sm:$0xf]
    %v69 = vld [vmem:[#allocation2 + $0x74] sm:$0xf]
    %v70 = vld [vmem:[#allocation2 + $0x78] sm:$0xf]
    %v71 = vld [vmem:[#allocation2 + $0x7c] sm:$0xf]
    %v72 = vld [vmem:[#allocation2 + $0x80] sm:$0xf]
    %v73 = vld [vmem:[#allocation2 + $0x84] sm:$0xf]
    %v74 = vld [vmem:[#allocation2 + $0x88] sm:$0xf]
    %v75 = vld [vmem:[#allocation2 + $0x8c] sm:$0xf]
    %v76 = vld [vmem:[#allocation2 + $0x90] sm:$0xf]
    %v77 = vld [vmem:[#allocation2 + $0x94] sm:$0xf]
    %v78 = vld [vmem:[#allocation2 + $0x98] sm:$0xf]
    %v79 = vld [vmem:[#allocation2 + $0x9c] sm:$0xf]
    %v80 = vld [vmem:[#allocation2 + $0xa0] sm:$0xf]
    %v81 = vld [vmem:[#allocation2 + $0xa4] sm:$0xf]
    %v82 = vld [vmem:[#allocation2 + $0xa8] sm:$0xf]
    %v83 = vld [vmem:[#allocation2 + $0xac] sm:$0xf]
    %v84 = vld [vmem:[#allocation2 + $0xb0] sm:$0xf]
    %v85 = vld [vmem:[#allocation2 + $0xb4] sm:$0xf]
    %v86 = vld [vmem:[#allocation2 + $0xb8] sm:$0xf]
    %v87 = vld [vmem:[#allocation2 + $0xbc] sm:$0xf]
    %v88 = vld [vmem:[#allocation2 + $0xc0] sm:$0xf]
    %v89 = vld [vmem:[#allocation2 + $0xc4] sm:$0xf]
    %v90 = vld [vmem:[#allocation2 + $0xc8] sm:$0xf]
    %v91 = vld [vmem:[#allocation2 + $0xcc] sm:$0xf]
    %v92 = vld [vmem:[#allocation2 + $0xd0] sm:$0xf]
    %v93 = vld [vmem:[#allocation2 + $0xd4] sm:$0xf]
    %v94 = vld [vmem:[#allocation2 + $0xd8] sm:$0xf]
    %v95 = vld [vmem:[#allocation2 + $0xdc] sm:$0xf]
    %v96 = vld [vmem:[#allocation2 + $0xe0] sm:$0xf]
    %v97 = vld [vmem:[#allocation2 + $0xe4] sm:$0xf]
    %v98 = vld [vmem:[#allocation2 + $0xe8] sm:$0xf]
    %v99 = vld [vmem:[#allocation2 + $0xec] sm:$0xf]
    %v100 = vld [vmem:[#allocation2 + $0xf0] sm:$0xf]
    %v101 = vld [vmem:[#allocation2 + $0xf4] sm:$0xf]
    %v102 = vld [vmem:[#allocation2 + $0xf8] sm:$0xf]
    %v103 = vld [vmem:[#allocation2 + $0xfc] sm:$0xf]
    %v104 = vld [vmem:[#allocation2 + $0x100] sm:$0xf]
    %v105 = vld [vmem:[#allocation2 + $0x104] sm:$0xf]
    %v106 = vld [vmem:[#allocation2 + $0x108] sm:$0xf]
    %v107 = vld [vmem:[#allocation2 + $0x10c] sm:$0xf]
    %v108 = vld [vmem:[#allocation2 + $0x110] sm:$0xf]
    %v109 = vld [vmem:[#allocation2 + $0x114] sm:$0xf]
    %v110 = vld [vmem:[%s3] sm:$0xff]
    %v111 = vld [vmem:[%s3 + $0x8] sm:$0xff]
    %v112 = vld [vmem:[%s3 + $0x10] sm:$0xff]
    %v113 = vld [vmem:[%s3 + $0x18] sm:$0xff]
    %v114 = vld [vmem:[%s3 + $0x20] sm:$0xff]
    %v115 = vld [vmem:[%s3 + $0x28] sm:$0xff]
    %v116 = vld [vmem:[%s3 + $0x30] sm:$0xf]
    %v117 = vld [vmem:[%s3 + $0x38] sm:$0x3]
    %v118 = vperm.slane %v110, 0
    %v123 = vunpack.c.l.b16 %v42
    %v124 = vunpack.c.l.b16 %v43
    %v125 = vunpack.c.l.b16 %v44
    %v126 = vunpack.c.l.b16 %v45
    %v127 = vpack.c.b16 %v124, %v123
    %v128 = vpack.c.b16 %v126, %v125
    %vm131 = vcmask 261120
    %v133 = vsel %vm131, %v37, 0
    %135 = vmatpush.bf16.msra.mxu0 0
    %136 = vmatpush.bf16.msra.mxu0 0
    %137 = vmatpush.bf16.msra.mxu0 0
    %138 = vmatpush.bf16.msra.mxu0 0
    %139 = vmatpush.bf16.msra.mxu0 0
    %140 = vmatpush.bf16.msra.mxu0 0
    %141 = vmatpush.bf16.msra.mxu0 %v128
    %142 = vmatpush.bf16.msra.mxu0 %v127
    %143 = vmatmul.bf16.gmra.mxu0 %v133
    %v144 = vpop.f32.mrf.mxu0
    %v145 = vadd.f32 %v118, %v144
    %v146 = vpop.f32.mrf.mxu0
    %v147 = vadd.f32 %v118, %v146
    %148 = vdwg.mxu0
    %v149 = vpack.c.bf16 %v145, %v145
    %v150 = vpack.c.bf16 %v147, %v147
    %v153 = vunpack.c.l.b16 %v149
    %v154 = vunpack.c.l.b16 %v150
    %v155 = vpack.c.b16 %v154, %v153
    %156 = vrot.lane.b32.xlu0 %v155, 96
    %v157 = vpop.permute.xlu0 %156
    %vm158 = vcmask 64512
    %v160 = vsel %vm158, %v155, 0
    %v163 = vsel %vm158, %v157, 0
    %165 = vmatpush.bf16.xpose.msra.mxu0 0
    %166 = vmatpush.bf16.xpose.msra.mxu0 0
    %167 = vmatpush.bf16.xpose.msra.mxu0 0
    %168 = vmatpush.bf16.xpose.msra.mxu0 0
    %169 = vmatpush.bf16.xpose.msra.mxu0 0
    %170 = vmatpush.bf16.xpose.msra.mxu0 0
    %171 = vmatpush.bf16.xpose.msra.mxu0 0
    %172 = vmatpush.bf16.xpose.msra.mxu0 %v163
    %173 = vmatmul.bf16.gmra.mxu0 %v160
    %v174 = vpop.f32.mrf.mxu0
    %v175 = vadd.f32 0.0, %v174
    %v176 = vpop.f32.mrf.mxu0
    %v177 = vadd.f32 0.0, %v176
    %178 = vdwg.mxu0
    %v179 = vmul.f32 %v175, 0.35355338
    %v180 = vmul.f32 %v177, 0.35355338
    %v181 = vadd.f32 %v179, %v38
    %v182 = vadd.f32 %v180, %v39
    %vm183 = vcmask 130048
    %v184 = vsel %vm183, %v181, -inf
    %185 = vmax.xlane.f32.xlu0 %v184
    %v186 = vpop.xlane.xlu0 %185
    %v187 = vsel %vm183, %v182, -inf
    %188 = vmax.xlane.f32.xlu0 %v187
    %v189 = vpop.xlane.xlu0 %188
    %v190 = vsub.f32 %v181, %v186
    %v191 = vsub.f32 %v182, %v189
    %v192 = vmul.f32 %v190, 1.442695
    %v193 = vpow.pop %v192
    %v194 = vmul.f32 %v191, 1.442695
    %v195 = vpow.pop %v194
    %v196 = vsel %vm183, %v193, 0.0
    %197 = vadd.xlane.f32.xlu0 %v196
    %v198 = vpop.xlane.xlu0 %197
    %v199 = vsel %vm183, %v195, 0.0
    %200 = vadd.xlane.f32.xlu0 %v199
    %v201 = vpop.xlane.xlu0 %200
    %v202 = vrcp.pop %v198
    %v203 = vrcp.pop %v201
    %v204 = vmul.f32 %v193, %v202
    %v205 = vmul.f32 %v195, %v203
    %v206 = vpack.c.bf16 %v205, %v204
    %207 = vrot.lane.b32.xlu0 %v155, 64
    %v208 = vpop.permute.xlu0 %207
    %v211 = vsel %vm183, %v206, 0
    %213 = vmatpush.bf16.msra.mxu0 0
    %214 = vmatpush.bf16.msra.mxu0 0
    %215 = vmatpush.bf16.msra.mxu0 0
    %216 = vmatpush.bf16.msra.mxu0 0
    %217 = vmatpush.bf16.msra.mxu0 0
    %218 = vmatpush.bf16.msra.mxu0 0
    %219 = vmatpush.bf16.msra.mxu0 0
    %220 = vmatpush.bf16.msra.mxu0 %v208
    %221 = vmatmul.bf16.gmra.mxu0 %v211
    %v222 = vpop.f32.mrf.mxu0
    %v223 = vadd.f32 0.0, %v222
    %v224 = vpop.f32.mrf.mxu0
    %v225 = vadd.f32 0.0, %v224
    %226 = vdwg.mxu0
    %227 = vrot.lane.b32.xlu0 %v155, 120
    %v228 = vpop.permute.xlu0 %227
    %229 = vrot.lane.b32.xlu0 %v155, 88
    %v230 = vpop.permute.xlu0 %229
    %v232 = vsel %vm158, %v228, 0
    %v235 = vsel %vm158, %v230, 0
    %237 = vmatpush.bf16.xpose.msra.mxu0 0
    %238 = vmatpush.bf16.xpose.msra.mxu0 0
    %239 = vmatpush.bf16.xpose.msra.mxu0 0
    %240 = vmatpush.bf16.xpose.msra.mxu0 0
    %241 = vmatpush.bf16.xpose.msra.mxu0 0
    %242 = vmatpush.bf16.xpose.msra.mxu0 0
    %243 = vmatpush.bf16.xpose.msra.mxu0 0
    %244 = vmatpush.bf16.xpose.msra.mxu0 %v235
    %245 = vmatmul.bf16.gmra.mxu0 %v232
    %v246 = vpop.f32.mrf.mxu0
    %v247 = vadd.f32 0.0, %v246
    %v248 = vpop.f32.mrf.mxu0
    %v249 = vadd.f32 0.0, %v248
    %250 = vdwg.mxu0
    %v251 = vmul.f32 %v247, 0.35355338
    %v252 = vmul.f32 %v249, 0.35355338
    %v253 = vadd.f32 %v251, %v38
    %v254 = vadd.f32 %v252, %v39
    %v255 = vsel %vm183, %v253, -inf
    %256 = vmax.xlane.f32.xlu0 %v255
    %v257 = vpop.xlane.xlu0 %256
    %v258 = vsel %vm183, %v254, -inf
    %259 = vmax.xlane.f32.xlu0 %v258
    %v260 = vpop.xlane.xlu0 %259
    %v261 = vsub.f32 %v253, %v257
    %v262 = vsub.f32 %v254, %v260
    %v263 = vmul.f32 %v261, 1.442695
    %v264 = vpow.pop %v263
    %v265 = vmul.f32 %v262, 1.442695
    %v266 = vpow.pop %v265
    %v267 = vsel %vm183, %v264, 0.0
    %268 = vadd.xlane.f32.xlu0 %v267
    %v269 = vpop.xlane.xlu0 %268
    %v270 = vsel %vm183, %v266, 0.0
    %271 = vadd.xlane.f32.xlu0 %v270
    %v272 = vpop.xlane.xlu0 %271
    %v273 = vrcp.pop %v269
    %v274 = vrcp.pop %v272
    %v275 = vmul.f32 %v264, %v273
    %v276 = vmul.f32 %v266, %v274
    %v277 = vpack.c.bf16 %v276, %v275
    %278 = vrot.lane.b32.xlu0 %v155, 56
    %v279 = vpop.permute.xlu0 %278
    %v282 = vsel %vm183, %v277, 0
    %284 = vmatpush.bf16.msra.mxu0 0
    %285 = vmatpush.bf16.msra.mxu0 0
    %286 = vmatpush.bf16.msra.mxu0 0
    %287 = vmatpush.bf16.msra.mxu0 0
    %288 = vmatpush.bf16.msra.mxu0 0
    %289 = vmatpush.bf16.msra.mxu0 0
    %290 = vmatpush.bf16.msra.mxu0 0
    %291 = vmatpush.bf16.msra.mxu0 %v279
    %292 = vmatmul.bf16.gmra.mxu0 %v282
    %v293 = vpop.f32.mrf.mxu0
    %v294 = vadd.f32 0.0, %v293
    %v295 = vpop.f32.mrf.mxu0
    %v296 = vadd.f32 0.0, %v295
    %297 = vdwg.mxu0
    %298 = vrot.lane.b32.xlu0 %v155, 112
    %v299 = vpop.permute.xlu0 %298
    %300 = vrot.lane.b32.xlu0 %v155, 80
    %v301 = vpop.permute.xlu0 %300
    %v303 = vsel %vm158, %v299, 0
    %v306 = vsel %vm158, %v301, 0
    %308 = vmatpush.bf16.xpose.msra.mxu0 0
    %309 = vmatpush.bf16.xpose.msra.mxu0 0
    %310 = vmatpush.bf16.xpose.msra.mxu0 0
    %311 = vmatpush.bf16.xpose.msra.mxu0 0
    %312 = vmatpush.bf16.xpose.msra.mxu0 0
    %313 = vmatpush.bf16.xpose.msra.mxu0 0
    %314 = vmatpush.bf16.xpose.msra.mxu0 0
    %315 = vmatpush.bf16.xpose.msra.mxu0 %v306
    %316 = vmatmul.bf16.gmra.mxu0 %v303
    %v317 = vpop.f32.mrf.mxu0
    %v318 = vadd.f32 0.0, %v317
    %v319 = vpop.f32.mrf.mxu0
    %v320 = vadd.f32 0.0, %v319
    %321 = vdwg.mxu0
    %v322 = vmul.f32 %v318, 0.35355338
    %v323 = vmul.f32 %v320, 0.35355338
    %v324 = vadd.f32 %v322, %v38
    %v325 = vadd.f32 %v323, %v39
    %v326 = vsel %vm183, %v324, -inf
    %327 = vmax.xlane.f32.xlu0 %v326
    %v328 = vpop.xlane.xlu0 %327
    %v329 = vsel %vm183, %v325, -inf
    %330 = vmax.xlane.f32.xlu0 %v329
    %v331 = vpop.xlane.xlu0 %330
    %v332 = vsub.f32 %v324, %v328
    %v333 = vsub.f32 %v325, %v331
    %v334 = vmul.f32 %v332, 1.442695
    %v335 = vpow.pop %v334
    %v336 = vmul.f32 %v333, 1.442695
    %v337 = vpow.pop %v336
    %v338 = vsel %vm183, %v335, 0.0
    %339 = vadd.xlane.f32.xlu0 %v338
    %v340 = vpop.xlane.xlu0 %339
    %v341 = vsel %vm183, %v337, 0.0
    %342 = vadd.xlane.f32.xlu0 %v341
    %v343 = vpop.xlane.xlu0 %342
    %v344 = vrcp.pop %v340
    %v345 = vrcp.pop %v343
    %v346 = vmul.f32 %v335, %v344
    %v347 = vmul.f32 %v337, %v345
    %v348 = vpack.c.bf16 %v347, %v346
    %349 = vrot.lane.b32.xlu0 %v155, 48
    %v350 = vpop.permute.xlu0 %349
    %v353 = vsel %vm183, %v348, 0
    %355 = vmatpush.bf16.msra.mxu0 0
    %356 = vmatpush.bf16.msra.mxu0 0
    %357 = vmatpush.bf16.msra.mxu0 0
    %358 = vmatpush.bf16.msra.mxu0 0
    %359 = vmatpush.bf16.msra.mxu0 0
    %360 = vmatpush.bf16.msra.mxu0 0
    %361 = vmatpush.bf16.msra.mxu0 0
    %362 = vmatpush.bf16.msra.mxu0 %v350
    %363 = vmatmul.bf16.gmra.mxu0 %v353
    %v364 = vpop.f32.mrf.mxu0
    %v365 = vadd.f32 0.0, %v364
    %v366 = vpop.f32.mrf.mxu0
    %v367 = vadd.f32 0.0, %v366
    %368 = vdwg.mxu0
    %369 = vrot.lane.b32.xlu0 %v155, 104
    %v370 = vpop.permute.xlu0 %369
    %371 = vrot.lane.b32.xlu0 %v155, 72
    %v372 = vpop.permute.xlu0 %371
    %v374 = vsel %vm158, %v370, 0
    %v377 = vsel %vm158, %v372, 0
    %379 = vmatpush.bf16.xpose.msra.mxu0 0
    %380 = vmatpush.bf16.xpose.msra.mxu0 0
    %381 = vmatpush.bf16.xpose.msra.mxu0 0
    %382 = vmatpush.bf16.xpose.msra.mxu0 0
    %383 = vmatpush.bf16.xpose.msra.mxu0 0
    %384 = vmatpush.bf16.xpose.msra.mxu0 0
    %385 = vmatpush.bf16.xpose.msra.mxu0 0
    %386 = vmatpush.bf16.xpose.msra.mxu0 %v377
    %387 = vmatmul.bf16.gmra.mxu0 %v374
    %v388 = vpop.f32.mrf.mxu0
    %v389 = vadd.f32 0.0, %v388
    %v390 = vpop.f32.mrf.mxu0
    %v391 = vadd.f32 0.0, %v390
    %392 = vdwg.mxu0
    %v393 = vmul.f32 %v389, 0.35355338
    %v394 = vmul.f32 %v391, 0.35355338
    %v395 = vadd.f32 %v393, %v38
    %v396 = vadd.f32 %v394, %v39
    %v397 = vsel %vm183, %v395, -inf
    %398 = vmax.xlane.f32.xlu0 %v397
    %v399 = vpop.xlane.xlu0 %398
    %v400 = vsel %vm183, %v396, -inf
    %401 = vmax.xlane.f32.xlu0 %v400
    %v402 = vpop.xlane.xlu0 %401
    %v403 = vsub.f32 %v395, %v399
    %v404 = vsub.f32 %v396, %v402
    %v405 = vmul.f32 %v403, 1.442695
    %v406 = vpow.pop %v405
    %v407 = vmul.f32 %v404, 1.442695
    %v408 = vpow.pop %v407
    %v409 = vsel %vm183, %v406, 0.0
    %410 = vadd.xlane.f32.xlu0 %v409
    %v411 = vpop.xlane.xlu0 %410
    %v412 = vsel %vm183, %v408, 0.0
    %413 = vadd.xlane.f32.xlu0 %v412
    %v414 = vpop.xlane.xlu0 %413
    %v415 = vrcp.pop %v411
    %v416 = vrcp.pop %v414
    %v417 = vmul.f32 %v406, %v415
    %v418 = vmul.f32 %v408, %v416
    %v419 = vpack.c.bf16 %v418, %v417
    %420 = vrot.lane.b32.xlu0 %v155, 40
    %v421 = vpop.permute.xlu0 %420
    %v424 = vsel %vm183, %v419, 0
    %426 = vmatpush.bf16.msra.mxu0 0
    %427 = vmatpush.bf16.msra.mxu0 0
    %428 = vmatpush.bf16.msra.mxu0 0
    %429 = vmatpush.bf16.msra.mxu0 0
    %430 = vmatpush.bf16.msra.mxu0 0
    %431 = vmatpush.bf16.msra.mxu0 0
    %432 = vmatpush.bf16.msra.mxu0 0
    %433 = vmatpush.bf16.msra.mxu0 %v421
    %434 = vmatmul.bf16.gmra.mxu0 %v424
    %v435 = vpop.f32.mrf.mxu0
    %v436 = vadd.f32 0.0, %v435
    %v437 = vpop.f32.mrf.mxu0
    %v438 = vadd.f32 0.0, %v437
    %439 = vdwg.mxu0
    %442 = vrot.lane.b32.xlu0 %v294, 8
    %v443 = vpop.permute.xlu0 %442
    %444 = vrot.lane.b32.xlu0 %v296, 8
    %v445 = vpop.permute.xlu0 %444
    %450 = vrot.lane.b32.xlu0 %v365, 16
    %v451 = vpop.permute.xlu0 %450
    %452 = vrot.lane.b32.xlu0 %v367, 16
    %v453 = vpop.permute.xlu0 %452
    %458 = vrot.lane.b32.xlu0 %v436, 24
    %v459 = vpop.permute.xlu0 %458
    %460 = vrot.lane.b32.xlu0 %v438, 24
    %v461 = vpop.permute.xlu0 %460
    %v464 = vsel %vm158, %v223, %v443
    %v465 = vsel %vm158, %v225, %v445
    %v466 = vsel %vm183, %v464, %v451
    %v467 = vsel %vm183, %v465, %v453
    %vm468 = vcmask 195584
    %v469 = vsel %vm468, %v466, %v459
    %v470 = vsel %vm468, %v467, %v461
    %v471 = vpack.c.bf16 %v470, %v469
    %v476 = vunpack.c.l.b16 %v46
    %v477 = vunpack.c.l.b16 %v47
    %v478 = vunpack.c.l.b16 %v48
    %v479 = vunpack.c.l.b16 %v49
    %v480 = vpack.c.b16 %v477, %v476
    %v481 = vpack.c.b16 %v479, %v478
    %v485 = vsel %vm131, %v471, 0
    %487 = vmatpush.bf16.msra.mxu0 0
    %488 = vmatpush.bf16.msra.mxu0 0
    %489 = vmatpush.bf16.msra.mxu0 0
    %490 = vmatpush.bf16.msra.mxu0 0
    %491 = vmatpush.bf16.msra.mxu0 0
    %492 = vmatpush.bf16.msra.mxu0 0
    %493 = vmatpush.bf16.msra.mxu0 %v481
    %494 = vmatpush.bf16.msra.mxu0 %v480
    %495 = vmatmul.bf16.gmra.mxu0 %v485
    %v496 = vpop.f32.mrf.mxu0
    %v497 = vadd.f32 0.0, %v496
    %v498 = vpop.f32.mrf.mxu0
    %v499 = vadd.f32 0.0, %v498
    %500 = vdwg.mxu0
    %v501 = vperm.slane %v110, 1
    %v502 = vadd.f32 %v497, %v501
    %v503 = vadd.f32 %v499, %v501
    %v504 = vadd.f32 %v35, %v502
    %v505 = vadd.f32 %v36, %v503
    %v506 = vsel %vm131, %v504, 0.0
    %507 = vadd.xlane.f32.xlu0 %v506
    %v508 = vpop.xlane.xlu0 %507
    %v509 = vsel %vm131, %v505, 0.0
    %510 = vadd.xlane.f32.xlu0 %v509
    %v511 = vpop.xlane.xlu0 %510
    %v512 = vrcp.pop 32.0
    %v513 = vmul.f32 32.0, %v512
    %v514 = vsub.f32 1.0, %v513
    %v515 = vmul.f32 %v512, %v514
    %v516 = vadd.f32 %v512, %v515
    %vm517 = vweird.f32 %v512
    %v518 = vsel %vm517, %v512, %v516
    %v519 = vmul.f32 %v508, %v518
    %v520 = vmul.f32 %v511, %v518
    %v521 = vsub.f32 %v504, %v519
    %v522 = vsub.f32 %v505, %v520
    %v523 = vmul.f32 %v521, %v521
    %v524 = vmul.f32 %v522, %v522
    %v525 = vsel %vm131, %v523, 0.0
    %526 = vadd.xlane.f32.xlu0 %v525
    %v527 = vpop.xlane.xlu0 %526
    %v528 = vsel %vm131, %v524, 0.0
    %529 = vadd.xlane.f32.xlu0 %v528
    %v530 = vpop.xlane.xlu0 %529
    %v531 = vmul.f32 %v527, %v518
    %v532 = vmul.f32 %v530, %v518
    %v533 = vadd.f32 %v531, 1e-05
    %v534 = vadd.f32 %v532, 1e-05
    %v535 = vrsqrt.pop %v533
    %v536 = vmul.f32 %v535, %v533
    %v537 = vmul.f32 %v536, %v535
    %v538 = vmul.f32 0.5, %v537
    %v539 = vsub.f32 1.5, %v538
    %v540 = vmul.f32 %v535, %v539
    %vm541 = vweird.f32 %v533
    %vm542 = vweird.f32 %v535
    %vm543 = vmor %vm541, %vm542
    %v544 = vsel %vm543, %v535, %v540
    %v545 = vrsqrt.pop %v534
    %v546 = vmul.f32 %v545, %v534
    %v547 = vmul.f32 %v546, %v545
    %v548 = vmul.f32 0.5, %v547
    %v549 = vsub.f32 1.5, %v548
    %v550 = vmul.f32 %v545, %v549
    %vm551 = vweird.f32 %v534
    %vm552 = vweird.f32 %v545
    %vm553 = vmor %vm551, %vm552
    %v554 = vsel %vm553, %v545, %v550
    %v555 = vmul.f32 %v521, %v544
    %v556 = vmul.f32 %v522, %v554
    %v557 = vperm.slane %v110, 2
    %v558 = vmul.f32 %v555, %v557
    %v559 = vmul.f32 %v556, %v557
    %v560 = vperm.slane %v110, 3
    %v561 = vadd.f32 %v558, %v560
    %v562 = vadd.f32 %v559, %v560
    %v563 = vpack.c.bf16 %v562, %v561
    %v564 = vperm.slane %v110, 4
    %v569 = vunpack.c.l.b16 %v50
    %v570 = vunpack.c.l.b16 %v51
    %v571 = vunpack.c.l.b16 %v52
    %v572 = vunpack.c.l.b16 %v53
    %v573 = vpack.c.b16 %v570, %v569
    %v574 = vpack.c.b16 %v572, %v571
    %v578 = vsel %vm131, %v563, 0
    %580 = vmatpush.bf16.msra.mxu0 0
    %581 = vmatpush.bf16.msra.mxu0 0
    %582 = vmatpush.bf16.msra.mxu0 0
    %583 = vmatpush.bf16.msra.mxu0 0
    %584 = vmatpush.bf16.msra.mxu0 0
    %585 = vmatpush.bf16.msra.mxu0 0
    %586 = vmatpush.bf16.msra.mxu0 %v574
    %587 = vmatpush.bf16.msra.mxu0 %v573
    %588 = vmatmul.bf16.gmra.mxu0 %v578
    %v589 = vpop.f32.mrf.mxu0
    %v590 = vadd.f32 %v564, %v589
    %v591 = vpop.f32.mrf.mxu0
    %v592 = vadd.f32 %v564, %v591
    %593 = vdwg.mxu0
    %v594 = vmul.f32 %v590, %v590
    %v595 = vmul.f32 %v592, %v592
    %v596 = vmul.f32 %v590, %v594
    %v597 = vmul.f32 %v592, %v595
    %v598 = vmul.f32 %v596, 0.044715
    %v599 = vmul.f32 %v597, 0.044715
    %v600 = vadd.f32 %v590, %v598
    %v601 = vadd.f32 %v592, %v599
    %v602 = vmul.f32 %v600, 0.7978846
    %v603 = vmul.f32 %v601, 0.7978846
    %v604 = vtanh.pop %v602
    %v605 = vtanh.pop %v603
    %v606 = vadd.f32 %v604, 1.0
    %v607 = vadd.f32 %v605, 1.0
    %v608 = vmul.f32 %v606, 0.5
    %v609 = vmul.f32 %v607, 0.5
    %v610 = vmul.f32 %v590, %v608
    %v611 = vmul.f32 %v592, %v609
    %v612 = vpack.c.bf16 %v611, %v610
    %v629 = vunpack.c.l.b16 %v54
    %v630 = vunpack.c.l.b16 %v55
    %v631 = vunpack.c.l.b16 %v56
    %v632 = vunpack.c.l.b16 %v57
    %v633 = vunpack.c.l.b16 %v58
    %v634 = vunpack.c.l.b16 %v59
    %v635 = vunpack.c.l.b16 %v60
    %v636 = vunpack.c.l.b16 %v61
    %v637 = vunpack.c.l.b16 %v62
    %v638 = vunpack.c.l.b16 %v63
    %v639 = vunpack.c.l.b16 %v64
    %v640 = vunpack.c.l.b16 %v65
    %v641 = vunpack.c.l.b16 %v66
    %v642 = vunpack.c.l.b16 %v67
    %v643 = vunpack.c.l.b16 %v68
    %v644 = vunpack.c.l.b16 %v69
    %v645 = vpack.c.b16 %v630, %v629
    %v646 = vpack.c.b16 %v632, %v631
    %v647 = vpack.c.b16 %v634, %v633
    %v648 = vpack.c.b16 %v636, %v635
    %v649 = vpack.c.b16 %v638, %v637
    %v650 = vpack.c.b16 %v640, %v639
    %v651 = vpack.c.b16 %v642, %v641
    %v652 = vpack.c.b16 %v644, %v643
    %661 = vmatpush.bf16.msra.mxu0 %v652
    %662 = vmatpush.bf16.msra.mxu0 %v651
    %663 = vmatpush.bf16.msra.mxu0 %v650
    %664 = vmatpush.bf16.msra.mxu0 %v649
    %665 = vmatpush.bf16.msra.mxu0 %v648
    %666 = vmatpush.bf16.msra.mxu0 %v647
    %667 = vmatpush.bf16.msra.mxu0 %v646
    %668 = vmatpush.bf16.msra.mxu0 %v645
    %669 = vmatmul.bf16.gmra.mxu0 %v612
    %v670 = vpop.f32.mrf.mxu0
    %v671 = vadd.f32 0.0, %v670
    %v672 = vpop.f32.mrf.mxu0
    %v673 = vadd.f32 0.0, %v672
    %674 = vdwg.mxu0
    %v675 = vperm.slane %v110, 5
    %v676 = vadd.f32 %v671, %v675
    %v677 = vadd.f32 %v673, %v675
    %v678 = vadd.f32 %v561, %v676
    %v679 = vadd.f32 %v562, %v677
    %v680 = vsel %vm131, %v678, 0.0
    %681 = vadd.xlane.f32.xlu0 %v680
    %v682 = vpop.xlane.xlu0 %681
    %v683 = vsel %vm131, %v679, 0.0
    %684 = vadd.xlane.f32.xlu0 %v683
    %v685 = vpop.xlane.xlu0 %684
    %v686 = vmul.f32 %v682, %v518
    %v687 = vmul.f32 %v685, %v518
    %v688 = vsub.f32 %v678, %v686
    %v689 = vsub.f32 %v679, %v687
    %v690 = vmul.f32 %v688, %v688
    %v691 = vmul.f32 %v689, %v689
    %v692 = vsel %vm131, %v690, 0.0
    %693 = vadd.xlane.f32.xlu0 %v692
    %v694 = vpop.xlane.xlu0 %693
    %v695 = vsel %vm131, %v691, 0.0
    %696 = vadd.xlane.f32.xlu0 %v695
    %v697 = vpop.xlane.xlu0 %696
    %v698 = vmul.f32 %v694, %v518
    %v699 = vmul.f32 %v697, %v518
    %v700 = vadd.f32 %v698, 1e-05
    %v701 = vadd.f32 %v699, 1e-05
    %v702 = vrsqrt.pop %v700
    %v703 = vmul.f32 %v702, %v700
    %v704 = vmul.f32 %v703, %v702
    %v705 = vmul.f32 0.5, %v704
    %v706 = vsub.f32 1.5, %v705
    %v707 = vmul.f32 %v702, %v706
    %vm708 = vweird.f32 %v700
    %vm709 = vweird.f32 %v702
    %vm710 = vmor %vm708, %vm709
    %v711 = vsel %vm710, %v702, %v707
    %v712 = vrsqrt.pop %v701
    %v713 = vmul.f32 %v712, %v701
    %v714 = vmul.f32 %v713, %v712
    %v715 = vmul.f32 0.5, %v714
    %v716 = vsub.f32 1.5, %v715
    %v717 = vmul.f32 %v712, %v716
    %vm718 = vweird.f32 %v701
    %vm719 = vweird.f32 %v712
    %vm720 = vmor %vm718, %vm719
    %v721 = vsel %vm720, %v712, %v717
    %v722 = vmul.f32 %v688, %v711
    %v723 = vmul.f32 %v689, %v721
    %v724 = vperm.slane %v110, 6
    %v725 = vmul.f32 %v722, %v724
    %v726 = vmul.f32 %v723, %v724
    %v727 = vperm.slane %v110, 7
    %v728 = vadd.f32 %v725, %v727
    %v729 = vadd.f32 %v726, %v727
    %v730 = vpack.c.bf16 %v729, %v728
    %v733 = vunpack.c.l.b16 %v40
    %v734 = vunpack.c.l.b16 %v41
    %v735 = vpack.c.b16 %v734, %v733
    %v737 = vsel %vm183, %v735, 0
    %739 = vmatpush.bf16.msra.mxu0 0
    %740 = vmatpush.bf16.msra.mxu0 0
    %741 = vmatpush.bf16.msra.mxu0 0
    %742 = vmatpush.bf16.msra.mxu0 0
    %743 = vmatpush.bf16.msra.mxu0 0
    %744 = vmatpush.bf16.msra.mxu0 0
    %745 = vmatpush.bf16.msra.mxu0 0
    %746 = vmatpush.bf16.msra.mxu0 %v730
    %747 = vmatmul.bf16.gmra.mxu0 %v737
    %v748 = vpop.f32.mrf.mxu0
    %v749 = vadd.f32 0.0, %v748
    %v750 = vpop.f32.mrf.mxu0
    %v751 = vadd.f32 0.0, %v750
    %752 = vdwg.mxu0
    %v753 = vpack.c.bf16 %v751, %v749
    %v754 = vperm.slane %v111, 0
    %v759 = vunpack.c.l.b16 %v70
    %v760 = vunpack.c.l.b16 %v71
    %v761 = vunpack.c.l.b16 %v72
    %v762 = vunpack.c.l.b16 %v73
    %v763 = vpack.c.b16 %v760, %v759
    %v764 = vpack.c.b16 %v762, %v761
    %v768 = vsel %vm131, %v753, 0
    %770 = vmatpush.bf16.msra.mxu0 0
    %771 = vmatpush.bf16.msra.mxu0 0
    %772 = vmatpush.bf16.msra.mxu0 0
    %773 = vmatpush.bf16.msra.mxu0 0
    %774 = vmatpush.bf16.msra.mxu0 0
    %775 = vmatpush.bf16.msra.mxu0 0
    %776 = vmatpush.bf16.msra.mxu0 %v764
    %777 = vmatpush.bf16.msra.mxu0 %v763
    %778 = vmatmul.bf16.gmra.mxu0 %v768
    %v779 = vpop.f32.mrf.mxu0
    %v780 = vadd.f32 %v754, %v779
    %v781 = vpop.f32.mrf.mxu0
    %v782 = vadd.f32 %v754, %v781
    %783 = vdwg.mxu0
    %v788 = vunpack.c.l.b16 %v74
    %v789 = vunpack.c.l.b16 %v75
    %v790 = vunpack.c.l.b16 %v76
    %v791 = vunpack.c.l.b16 %v77
    %v792 = vpack.c.b16 %v789, %v788
    %v793 = vpack.c.b16 %v791, %v790
    %v797 = vsel %vm131, 0, 0
    %799 = vmatpush.bf16.msra.mxu0 0
    %800 = vmatpush.bf16.msra.mxu0 0
    %801 = vmatpush.bf16.msra.mxu0 0
    %802 = vmatpush.bf16.msra.mxu0 0
    %803 = vmatpush.bf16.msra.mxu0 0
    %804 = vmatpush.bf16.msra.mxu0 0
    %805 = vmatpush.bf16.msra.mxu0 %v793
    %806 = vmatpush.bf16.msra.mxu0 %v792
    %807 = vmatmul.bf16.gmra.mxu0 %v797
    %v808 = vpop.f32.mrf.mxu0
    %v809 = vadd.f32 0.0, %v808
    %v810 = vpop.f32.mrf.mxu0
    %811 = vdwg.mxu0
    %v812 = vadd.f32 %v780, %v809
    %v813 = vxor.u32 %v812, 2147483648
    %v814 = vmul.f32 %v813, 1.442695
    %v815 = vpow.pop %v814
    %v816 = vadd.f32 %v815, 1.0
    %v817 = vrcp.pop %v816
    %v818 = vmul.f32 %v816, %v817
    %v819 = vsub.f32 1.0, %v818
    %v820 = vmul.f32 %v817, %v819
    %v821 = vadd.f32 %v817, %v820
    %vm822 = vweird.f32 %v816
    %vm823 = vweird.f32 %v817
    %vm824 = vmor %vm822, %vm823
    %v825 = vsel %vm824, %v817, %v821
    %v826 = vand.u32 2147483647, %v816
    %vm827 = vcmp.eq.f32.partialorder %v826, 8.507059e+37
    %v828 = vand.u32 %v816, 2147483648
    %v829 = vor.u32 1.1754944e-38, %v828
    %v830 = vsel %vm827, %v829, %v825
    %v831 = vmul.f32 1.0, %v830
    %v832 = vmul.f32 %v831, 2.0
    %v833 = vsub.f32 %v832, 1.0
    %v834 = vmul.f32 %v831, 0.0
    %836 = vrot.lane.b32.xlu0 %v833, 64
    %v837 = vpop.permute.xlu0 %836
    %v839 = vmul.f32 %v831, %v837
    %841 = vrot.lane.b32.xlu0 %v839, 32
    %v842 = vpop.permute.xlu0 %841
    %v844 = vadd.f32 %v834, %v842
    %v845 = vtanh.pop %v844
    %847 = vrot.lane.b32.xlu0 %v845, 64
    %v848 = vpop.permute.xlu0 %847
    %v850 = vmul.f32 %v831, %v848
    %v851 = vpack.c.bf16 %v850, %v850
    %853 = vrot.lane.b32.xlu0 %v851, 32
    %v854 = vpop.permute.xlu0 %853
    %v856 = vsel %vm131, %v854, 0
    %858 = vmatpush.bf16.msra.mxu0 0
    %859 = vmatpush.bf16.msra.mxu0 0
    %860 = vmatpush.bf16.msra.mxu0 0
    %861 = vmatpush.bf16.msra.mxu0 0
    %862 = vmatpush.bf16.msra.mxu0 0
    %863 = vmatpush.bf16.msra.mxu0 0
    %864 = vmatpush.bf16.msra.mxu0 %v793
    %865 = vmatpush.bf16.msra.mxu0 %v792
    %866 = vmatmul.bf16.gmra.mxu0 %v856
    %v867 = vpop.f32.mrf.mxu0
    %v868 = vadd.f32 0.0, %v867
    %v869 = vpop.f32.mrf.mxu0
    %870 = vdwg.mxu0
    %v872 = vrot.slane %v868, 6
    %v874 = vadd.f32 %v780, %v872
    %v875 = vxor.u32 %v874, 2147483648
    %v876 = vmul.f32 %v875, 1.442695
    %v877 = vpow.pop %v876
    %v878 = vadd.f32 %v877, 1.0
    %v879 = vrcp.pop %v878
    %v880 = vmul.f32 %v878, %v879
    %v881 = vsub.f32 1.0, %v880
    %v882 = vmul.f32 %v879, %v881
    %v883 = vadd.f32 %v879, %v882
    %vm884 = vweird.f32 %v878
    %vm885 = vweird.f32 %v879
    %vm886 = vmor %vm884, %vm885
    %v887 = vsel %vm886, %v879, %v883
    %v888 = vand.u32 2147483647, %v878
    %vm889 = vcmp.eq.f32.partialorder %v888, 8.507059e+37
    %v890 = vand.u32 %v878, 2147483648
    %v891 = vor.u32 1.1754944e-38, %v890
    %v892 = vsel %vm889, %v891, %v887
    %v893 = vmul.f32 1.0, %v892
    %v894 = vmul.f32 %v893, 2.0
    %v895 = vsub.f32 %v894, 1.0
    %v897 = vrot.slane %v844, 6
    %v899 = vmul.f32 %v893, %v897
    %901 = vrot.lane.b32.xlu0 %v895, 64
    %v902 = vpop.permute.xlu0 %901
    %v904 = vmul.f32 %v893, %v902
    %906 = vrot.lane.b32.xlu0 %v904, 32
    %v907 = vpop.permute.xlu0 %906
    %v909 = vadd.f32 %v899, %v907
    %v910 = vtanh.pop %v909
    %912 = vrot.lane.b32.xlu0 %v910, 64
    %v913 = vpop.permute.xlu0 %912
    %v915 = vmul.f32 %v893, %v913
    %v916 = vpack.c.bf16 %v915, %v915
    %v918 = vrot.slane %v916, 1
    %919 = vrot.lane.b32.xlu0 %v918, 32
    %v920 = vpop.permute.xlu0 %919
    %v922 = vsel %vm131, %v920, 0
    %924 = vmatpush.bf16.msra.mxu0 0
    %925 = vmatpush.bf16.msra.mxu0 0
    %926 = vmatpush.bf16.msra.mxu0 0
    %927 = vmatpush.bf16.msra.mxu0 0
    %928 = vmatpush.bf16.msra.mxu0 0
    %929 = vmatpush.bf16.msra.mxu0 0
    %930 = vmatpush.bf16.msra.mxu0 %v793
    %931 = vmatpush.bf16.msra.mxu0 %v792
    %932 = vmatmul.bf16.gmra.mxu0 %v922
    %v933 = vpop.f32.mrf.mxu0
    %v934 = vadd.f32 0.0, %v933
    %v935 = vpop.f32.mrf.mxu0
    %936 = vdwg.mxu0
    %v938 = vrot.slane %v934, 4
    %v940 = vadd.f32 %v780, %v938
    %v941 = vxor.u32 %v940, 2147483648
    %v942 = vmul.f32 %v941, 1.442695
    %v943 = vpow.pop %v942
    %v944 = vadd.f32 %v943, 1.0
    %v945 = vrcp.pop %v944
    %v946 = vmul.f32 %v944, %v945
    %v947 = vsub.f32 1.0, %v946
    %v948 = vmul.f32 %v945, %v947
    %v949 = vadd.f32 %v945, %v948
    %vm950 = vweird.f32 %v944
    %vm951 = vweird.f32 %v945
    %vm952 = vmor %vm950, %vm951
    %v953 = vsel %vm952, %v945, %v949
    %v954 = vand.u32 2147483647, %v944
    %vm955 = vcmp.eq.f32.partialorder %v954, 8.507059e+37
    %v956 = vand.u32 %v944, 2147483648
    %v957 = vor.u32 1.1754944e-38, %v956
    %v958 = vsel %vm955, %v957, %v953
    %v959 = vmul.f32 1.0, %v958
    %v960 = vmul.f32 %v959, 2.0
    %v961 = vsub.f32 %v960, 1.0
    %v963 = vrot.slane %v909, 6
    %v965 = vmul.f32 %v959, %v963
    %967 = vrot.lane.b32.xlu0 %v961, 64
    %v968 = vpop.permute.xlu0 %967
    %v970 = vmul.f32 %v959, %v968
    %972 = vrot.lane.b32.xlu0 %v970, 32
    %v973 = vpop.permute.xlu0 %972
    %v975 = vadd.f32 %v965, %v973
    %v976 = vtanh.pop %v975
    %978 = vrot.lane.b32.xlu0 %v976, 64
    %v979 = vpop.permute.xlu0 %978
    %v981 = vmul.f32 %v959, %v979
    %v982 = vpack.c.bf16 %v981, %v981
    %v984 = vrot.slane %v982, 2
    %985 = vrot.lane.b32.xlu0 %v984, 32
    %v986 = vpop.permute.xlu0 %985
    %v988 = vsel %vm131, %v986, 0
    %990 = vmatpush.bf16.msra.mxu0 0
    %991 = vmatpush.bf16.msra.mxu0 0
    %992 = vmatpush.bf16.msra.mxu0 0
    %993 = vmatpush.bf16.msra.mxu0 0
    %994 = vmatpush.bf16.msra.mxu0 0
    %995 = vmatpush.bf16.msra.mxu0 0
    %996 = vmatpush.bf16.msra.mxu0 %v793
    %997 = vmatpush.bf16.msra.mxu0 %v792
    %998 = vmatmul.bf16.gmra.mxu0 %v988
    %v999 = vpop.f32.mrf.mxu0
    %v1000 = vadd.f32 0.0, %v999
    %v1001 = vpop.f32.mrf.mxu0
    %1002 = vdwg.mxu0
    %v1004 = vrot.slane %v1000, 2
    %v1006 = vadd.f32 %v780, %v1004
    %v1007 = vxor.u32 %v1006, 2147483648
    %v1008 = vmul.f32 %v1007, 1.442695
    %v1009 = vpow.pop %v1008
    %v1010 = vadd.f32 %v1009, 1.0
    %v1011 = vrcp.pop %v1010
    %v1012 = vmul.f32 %v1010, %v1011
    %v1013 = vsub.f32 1.0, %v1012
    %v1014 = vmul.f32 %v1011, %v1013
    %v1015 = vadd.f32 %v1011, %v1014
    %vm1016 = vweird.f32 %v1010
    %vm1017 = vweird.f32 %v1011
    %vm1018 = vmor %vm1016, %vm1017
    %v1019 = vsel %vm1018, %v1011, %v1015
    %v1020 = vand.u32 2147483647, %v1010
    %vm1021 = vcmp.eq.f32.partialorder %v1020, 8.507059e+37
    %v1022 = vand.u32 %v1010, 2147483648
    %v1023 = vor.u32 1.1754944e-38, %v1022
    %v1024 = vsel %vm1021, %v1023, %v1019
    %v1025 = vmul.f32 1.0, %v1024
    %v1026 = vmul.f32 %v1025, 2.0
    %v1027 = vsub.f32 %v1026, 1.0
    %v1029 = vrot.slane %v975, 6
    %v1031 = vmul.f32 %v1025, %v1029
    %1033 = vrot.lane.b32.xlu0 %v1027, 64
    %v1034 = vpop.permute.xlu0 %1033
    %v1036 = vmul.f32 %v1025, %v1034
    %1038 = vrot.lane.b32.xlu0 %v1036, 32
    %v1039 = vpop.permute.xlu0 %1038
    %v1041 = vadd.f32 %v1031, %v1039
    %v1042 = vtanh.pop %v1041
    %1044 = vrot.lane.b32.xlu0 %v1042, 64
    %v1045 = vpop.permute.xlu0 %1044
    %v1047 = vmul.f32 %v1025, %v1045
    %v1048 = vpack.c.bf16 %v1047, %v1047
    %v1050 = vrot.slane %v1048, 3
    %1051 = vrot.lane.b32.xlu0 %v1050, 32
    %v1052 = vpop.permute.xlu0 %1051
    %v1054 = vsel %vm131, %v1052, 0
    %1056 = vmatpush.bf16.msra.mxu0 0
    %1057 = vmatpush.bf16.msra.mxu0 0
    %1058 = vmatpush.bf16.msra.mxu0 0
    %1059 = vmatpush.bf16.msra.mxu0 0
    %1060 = vmatpush.bf16.msra.mxu0 0
    %1061 = vmatpush.bf16.msra.mxu0 0
    %1062 = vmatpush.bf16.msra.mxu0 %v793
    %1063 = vmatpush.bf16.msra.mxu0 %v792
    %1064 = vmatmul.bf16.gmra.mxu0 %v1054
    %v1065 = vpop.f32.mrf.mxu0
    %v1066 = vadd.f32 0.0, %v1065
    %v1067 = vpop.f32.mrf.mxu0
    %1068 = vdwg.mxu0
    %v1069 = vadd.f32 %v782, %v1066
    %v1070 = vxor.u32 %v1069, 2147483648
    %v1071 = vmul.f32 %v1070, 1.442695
    %v1072 = vpow.pop %v1071
    %v1073 = vadd.f32 %v1072, 1.0
    %v1074 = vrcp.pop %v1073
    %v1075 = vmul.f32 %v1073, %v1074
    %v1076 = vsub.f32 1.0, %v1075
    %v1077 = vmul.f32 %v1074, %v1076
    %v1078 = vadd.f32 %v1074, %v1077
    %vm1079 = vweird.f32 %v1073
    %vm1080 = vweird.f32 %v1074
    %vm1081 = vmor %vm1079, %vm1080
    %v1082 = vsel %vm1081, %v1074, %v1078
    %v1083 = vand.u32 2147483647, %v1073
    %vm1084 = vcmp.eq.f32.partialorder %v1083, 8.507059e+37
    %v1085 = vand.u32 %v1073, 2147483648
    %v1086 = vor.u32 1.1754944e-38, %v1085
    %v1087 = vsel %vm1084, %v1086, %v1082
    %v1088 = vmul.f32 1.0, %v1087
    %v1089 = vmul.f32 %v1088, 2.0
    %v1090 = vsub.f32 %v1089, 1.0
    %v1092 = vrot.slane %v1041, 6
    %v1094 = vmul.f32 %v1088, %v1092
    %1096 = vrot.lane.b32.xlu0 %v1090, 64
    %v1097 = vpop.permute.xlu0 %1096
    %v1099 = vmul.f32 %v1088, %v1097
    %1101 = vrot.lane.b32.xlu0 %v1099, 32
    %v1102 = vpop.permute.xlu0 %1101
    %v1104 = vadd.f32 %v1094, %v1102
    %v1105 = vtanh.pop %v1104
    %1107 = vrot.lane.b32.xlu0 %v1105, 64
    %v1108 = vpop.permute.xlu0 %1107
    %v1110 = vmul.f32 %v1088, %v1108
    %v1111 = vpack.c.bf16 %v1110, %v1110
    %1113 = vrot.lane.b32.xlu0 %v1111, 32
    %v1114 = vpop.permute.xlu0 %1113
    %v1116 = vsel %vm131, %v1114, 0
    %1118 = vmatpush.bf16.msra.mxu0 0
    %1119 = vmatpush.bf16.msra.mxu0 0
    %1120 = vmatpush.bf16.msra.mxu0 0
    %1121 = vmatpush.bf16.msra.mxu0 0
    %1122 = vmatpush.bf16.msra.mxu0 0
    %1123 = vmatpush.bf16.msra.mxu0 0
    %1124 = vmatpush.bf16.msra.mxu0 %v793
    %1125 = vmatpush.bf16.msra.mxu0 %v792
    %1126 = vmatmul.bf16.gmra.mxu0 %v1116
    %v1127 = vpop.f32.mrf.mxu0
    %v1128 = vadd.f32 0.0, %v1127
    %v1129 = vpop.f32.mrf.mxu0
    %1130 = vdwg.mxu0
    %v1132 = vrot.slane %v1128, 6
    %v1134 = vadd.f32 %v782, %v1132
    %v1135 = vxor.u32 %v1134, 2147483648
    %v1136 = vmul.f32 %v1135, 1.442695
    %v1137 = vpow.pop %v1136
    %v1138 = vadd.f32 %v1137, 1.0
    %v1139 = vrcp.pop %v1138
    %v1140 = vmul.f32 %v1138, %v1139
    %v1141 = vsub.f32 1.0, %v1140
    %v1142 = vmul.f32 %v1139, %v1141
    %v1143 = vadd.f32 %v1139, %v1142
    %vm1144 = vweird.f32 %v1138
    %vm1145 = vweird.f32 %v1139
    %vm1146 = vmor %vm1144, %vm1145
    %v1147 = vsel %vm1146, %v1139, %v1143
    %v1148 = vand.u32 2147483647, %v1138
    %vm1149 = vcmp.eq.f32.partialorder %v1148, 8.507059e+37
    %v1150 = vand.u32 %v1138, 2147483648
    %v1151 = vor.u32 1.1754944e-38, %v1150
    %v1152 = vsel %vm1149, %v1151, %v1147
    %v1153 = vmul.f32 1.0, %v1152
    %v1154 = vmul.f32 %v1153, 2.0
    %v1155 = vsub.f32 %v1154, 1.0
    %v1157 = vrot.slane %v1104, 6
    %v1159 = vmul.f32 %v1153, %v1157
    %1161 = vrot.lane.b32.xlu0 %v1155, 64
    %v1162 = vpop.permute.xlu0 %1161
    %v1164 = vmul.f32 %v1153, %v1162
    %1166 = vrot.lane.b32.xlu0 %v1164, 32
    %v1167 = vpop.permute.xlu0 %1166
    %v1169 = vadd.f32 %v1159, %v1167
    %v1170 = vtanh.pop %v1169
    %1172 = vrot.lane.b32.xlu0 %v1170, 64
    %v1173 = vpop.permute.xlu0 %1172
    %v1175 = vmul.f32 %v1153, %v1173
    %v1176 = vpack.c.bf16 %v1175, %v1175
    %v1178 = vrot.slane %v1176, 1
    %1179 = vrot.lane.b32.xlu0 %v1178, 32
    %v1180 = vpop.permute.xlu0 %1179
    %v1182 = vsel %vm131, %v1180, 0
    %1184 = vmatpush.bf16.msra.mxu0 0
    %1185 = vmatpush.bf16.msra.mxu0 0
    %1186 = vmatpush.bf16.msra.mxu0 0
    %1187 = vmatpush.bf16.msra.mxu0 0
    %1188 = vmatpush.bf16.msra.mxu0 0
    %1189 = vmatpush.bf16.msra.mxu0 0
    %1190 = vmatpush.bf16.msra.mxu0 %v793
    %1191 = vmatpush.bf16.msra.mxu0 %v792
    %1192 = vmatmul.bf16.gmra.mxu0 %v1182
    %v1193 = vpop.f32.mrf.mxu0
    %v1194 = vadd.f32 0.0, %v1193
    %v1195 = vpop.f32.mrf.mxu0
    %1196 = vdwg.mxu0
    %v1198 = vrot.slane %v1194, 4
    %v1200 = vadd.f32 %v782, %v1198
    %v1201 = vxor.u32 %v1200, 2147483648
    %v1202 = vmul.f32 %v1201, 1.442695
    %v1203 = vpow.pop %v1202
    %v1204 = vadd.f32 %v1203, 1.0
    %v1205 = vrcp.pop %v1204
    %v1206 = vmul.f32 %v1204, %v1205
    %v1207 = vsub.f32 1.0, %v1206
    %v1208 = vmul.f32 %v1205, %v1207
    %v1209 = vadd.f32 %v1205, %v1208
    %vm1210 = vweird.f32 %v1204
    %vm1211 = vweird.f32 %v1205
    %vm1212 = vmor %vm1210, %vm1211
    %v1213 = vsel %vm1212, %v1205, %v1209
    %v1214 = vand.u32 2147483647, %v1204
    %vm1215 = vcmp.eq.f32.partialorder %v1214, 8.507059e+37
    %v1216 = vand.u32 %v1204, 2147483648
    %v1217 = vor.u32 1.1754944e-38, %v1216
    %v1218 = vsel %vm1215, %v1217, %v1213
    %v1219 = vmul.f32 1.0, %v1218
    %v1220 = vmul.f32 %v1219, 2.0
    %v1221 = vsub.f32 %v1220, 1.0
    %v1223 = vrot.slane %v1169, 6
    %v1225 = vmul.f32 %v1219, %v1223
    %1227 = vrot.lane.b32.xlu0 %v1221, 64
    %v1228 = vpop.permute.xlu0 %1227
    %v1230 = vmul.f32 %v1219, %v1228
    %1232 = vrot.lane.b32.xlu0 %v1230, 32
    %v1233 = vpop.permute.xlu0 %1232
    %v1235 = vadd.f32 %v1225, %v1233
    %v1236 = vtanh.pop %v1235
    %1238 = vrot.lane.b32.xlu0 %v1236, 64
    %v1239 = vpop.permute.xlu0 %1238
    %v1241 = vmul.f32 %v1219, %v1239
    %vm1242 = vcmask 1041408
    %v1243 = vsel %vm1242, %v850, %v915
    %vm1244 = vcmask 1043456
    %v1245 = vsel %vm1244, %v1243, %v981
    %vm1246 = vcmask 1045504
    %v1247 = vsel %vm1246, %v1245, %v1047
    %v1248 = vsel %vm1242, %v1110, %v1175
    %v1249 = vsel %vm1244, %v1248, %v1241
    %v1250 = vpack.c.bf16 %v1249, %v1247
    %v1251 = vpack.c.bf16 %v751, %v751
    %v1253 = vrot.slane %v1251, 3
    %v1258 = vunpack.c.l.b16 %v78
    %v1259 = vunpack.c.l.b16 %v79
    %v1260 = vunpack.c.l.b16 %v80
    %v1261 = vunpack.c.l.b16 %v81
    %v1262 = vpack.c.b16 %v1259, %v1258
    %v1263 = vpack.c.b16 %v1261, %v1260
    %v1267 = vsel %vm131, %v1253, 0
    %1269 = vmatpush.bf16.msra.mxu0 0
    %1270 = vmatpush.bf16.msra.mxu0 0
    %1271 = vmatpush.bf16.msra.mxu0 0
    %1272 = vmatpush.bf16.msra.mxu0 0
    %1273 = vmatpush.bf16.msra.mxu0 0
    %1274 = vmatpush.bf16.msra.mxu0 0
    %1275 = vmatpush.bf16.msra.mxu0 %v1263
    %1276 = vmatpush.bf16.msra.mxu0 %v1262
    %1277 = vmatmul.bf16.gmra.mxu0 %v1267
    %v1278 = vpop.f32.mrf.mxu0
    %v1279 = vadd.f32 0.0, %v1278
    %v1280 = vpop.f32.mrf.mxu0
    %1281 = vdwg.mxu0
    %v1282 = vperm.slane %v111, 1
    %v1283 = vadd.f32 %v1279, %v1282
    %1285 = vrot.lane.b32.xlu0 %v1250, 32
    %v1286 = vpop.permute.xlu0 %1285
    %v1291 = vunpack.c.l.b16 %v82
    %v1292 = vunpack.c.l.b16 %v83
    %v1293 = vunpack.c.l.b16 %v84
    %v1294 = vunpack.c.l.b16 %v85
    %v1295 = vpack.c.b16 %v1292, %v1291
    %v1296 = vpack.c.b16 %v1294, %v1293
    %v1300 = vsel %vm131, %v1286, 0
    %1302 = vmatpush.bf16.msra.mxu0 0
    %1303 = vmatpush.bf16.msra.mxu0 0
    %1304 = vmatpush.bf16.msra.mxu0 0
    %1305 = vmatpush.bf16.msra.mxu0 0
    %1306 = vmatpush.bf16.msra.mxu0 0
    %1307 = vmatpush.bf16.msra.mxu0 0
    %1308 = vmatpush.bf16.msra.mxu0 %v1296
    %1309 = vmatpush.bf16.msra.mxu0 %v1295
    %1310 = vmatmul.bf16.gmra.mxu0 %v1300
    %v1311 = vpop.f32.mrf.mxu0
    %v1312 = vadd.f32 0.0, %v1311
    %v1313 = vpop.f32.mrf.mxu0
    %v1314 = vadd.f32 0.0, %v1313
    %1315 = vdwg.mxu0
    %v1316 = vperm.slane %v111, 2
    %v1317 = vadd.f32 %v1312, %v1316
    %v1318 = vadd.f32 %v1314, %v1316
    %v1323 = vunpack.c.l.b16 %v86
    %v1324 = vunpack.c.l.b16 %v87
    %v1325 = vunpack.c.l.b16 %v88
    %v1326 = vunpack.c.l.b16 %v89
    %v1327 = vpack.c.b16 %v1324, %v1323
    %v1328 = vpack.c.b16 %v1326, %v1325
    %1331 = vmatpush.bf16.msra.mxu0 0
    %1332 = vmatpush.bf16.msra.mxu0 0
    %1333 = vmatpush.bf16.msra.mxu0 0
    %1334 = vmatpush.bf16.msra.mxu0 0
    %1335 = vmatpush.bf16.msra.mxu0 0
    %1336 = vmatpush.bf16.msra.mxu0 0
    %1337 = vmatpush.bf16.msra.mxu0 %v1328
    %1338 = vmatpush.bf16.msra.mxu0 %v1327
    %1339 = vmatmul.bf16.gmra.mxu0 %v1300
    %v1340 = vpop.f32.mrf.mxu0
    %v1341 = vadd.f32 0.0, %v1340
    %v1342 = vpop.f32.mrf.mxu0
    %v1343 = vadd.f32 0.0, %v1342
    %1344 = vdwg.mxu0
    %v1345 = vperm.slane %v111, 3
    %v1346 = vadd.f32 %v1341, %v1345
    %v1347 = vadd.f32 %v1343, %v1345
    %v1349 = vrot.slane %v1283, 6
    %v1351 = vrot.slane %v1283, 4
    %v1353 = vrot.slane %v1283, 2
    %v1355 = vsel %vm1242, %v1283, %v1349
    %v1356 = vsel %vm1244, %v1355, %v1351
    %v1357 = vsel %vm1246, %v1356, %v1353
    %v1358 = vmul.f32 %v1357, %v1317
    %v1359 = vmul.f32 %v1356, %v1318
    %v1361 = vsel %vm131, %v1358, 0
    %v1364 = vsel %vm131, %v1359, 0
    %1366 = vmatpush.msra.mxu0 0.0
    %1367 = vmatpush.msra.mxu0 0.0
    %1368 = vmatpush.msra.mxu0 0.0
    %1369 = vmatpush.msra.mxu0 0.0
    %1370 = vmatpush.msra.mxu0 0.0
    %1371 = vmatpush.msra.mxu0 0.0
    %1372 = vmatpush.msra.mxu0 0.0
    %1373 = vmatpush.msra.mxu0 0.0
    %1374 = vmatpush.msra.mxu0 0.0
    %1375 = vmatpush.msra.mxu0 0.0
    %1376 = vmatpush.msra.mxu0 0.0
    %1377 = vmatpush.msra.mxu0 0.0
    %1378 = vmatpush.msra.mxu0 %v115
    %1379 = vmatpush.msra.mxu0 %v114
    %1380 = vmatpush.msra.mxu0 %v113
    %1381 = vmatpush.msra.mxu0 %v112
    %1382 = vmatmul.f32.gmra.mxu0 %v1361
    %v1383 = vpop.f32.mrf.mxu0
    %v1384 = vadd.f32 0.0, %v1383
    %1385 = vmatmul.f32.gmra.mxu0 %v1364
    %v1386 = vpop.f32.mrf.mxu0
    %v1387 = vadd.f32 0.0, %v1386
    %1388 = vdwg.mxu0
    %v1389 = vmul.f32 %v1384, 0.35355338
    %v1390 = vmul.f32 %v1387, 0.35355338
    %vm1391 = vcmask 31744
    %v1392 = vsel %vm1391, %v1389, -inf
    %1393 = vmax.xlane.f32.xlu0 %v1392
    %v1394 = vpop.xlane.xlu0 %1393
    %vm1395 = vcmask 29696
    %v1396 = vsel %vm1395, %v1390, -inf
    %1397 = vmax.xlane.f32.xlu0 %v1396
    %v1398 = vpop.xlane.xlu0 %1397
    %v1399 = vsel %vm1246, %v1398, -inf
    %v1400 = vmax.f32 %v1394, %v1399
    %v1401 = vrot.slane %v1400, 4
    %v1402 = vmax.f32 %v1400, %v1401
    %v1403 = vrot.slane %v1402, 2
    %v1404 = vmax.f32 %v1402, %v1403
    %v1405 = vrot.slane %v1404, 1
    %v1406 = vmax.f32 %v1404, %v1405
    %v1407 = vsub.f32 %v1389, %v1406
    %v1408 = vsub.f32 %v1390, %v1406
    %v1409 = vmul.f32 %v1407, 1.442695
    %v1410 = vpow.pop %v1409
    %v1411 = vmul.f32 %v1408, 1.442695
    %v1412 = vpow.pop %v1411
    %vm1413 = vcmask 113664
    %v1415 = vsel %vm1413, %v117, 0
    %v1418 = vsel %vm1246, %v1412, 0
    %1420 = vmatpush.msra.mxu0 0.0
    %1421 = vmatpush.msra.mxu0 0.0
    %1422 = vmatpush.msra.mxu0 0.0
    %1423 = vmatpush.msra.mxu0 0.0
    %1424 = vmatpush.msra.mxu0 0.0
    %1425 = vmatpush.msra.mxu0 0.0
    %1426 = vmatpush.msra.mxu0 0.0
    %1427 = vmatpush.msra.mxu0 0.0
    %1428 = vmatpush.msra.mxu0 0.0
    %1429 = vmatpush.msra.mxu0 0.0
    %1430 = vmatpush.msra.mxu0 0.0
    %1431 = vmatpush.msra.mxu0 0.0
    %1432 = vmatpush.msra.mxu0 0.0
    %1433 = vmatpush.msra.mxu0 0.0
    %1434 = vmatpush.msra.mxu0 %v1418
    %1435 = vmatpush.msra.mxu0 %v1410
    %1436 = vmatmul.f32.gmra.mxu0 %v1415
    %v1437 = vpop.f32.mrf.mxu0
    %v1438 = vadd.f32 0.0, %v1437
    %1439 = vdwg.mxu0
    %v1440 = vrcp.pop %v1438
    %v1442 = vrot.slane %v1440, 6
    %v1444 = vrot.slane %v1440, 4
    %v1446 = vrot.slane %v1440, 2
    %v1448 = vsel %vm1242, %v1440, %v1442
    %v1449 = vsel %vm1244, %v1448, %v1444
    %v1450 = vsel %vm1246, %v1449, %v1446
    %v1451 = vmul.f32 %v1410, %v1450
    %v1452 = vmul.f32 %v1412, %v1449
    %v1454 = vsel %vm1391, %v1451, 0
    %v1457 = vsel %vm1391, %v1452, 0
    %v1460 = vsel %vm1244, %v116, 0
    %1462 = vmatpush.msra.mxu0 0.0
    %1463 = vmatpush.msra.mxu0 0.0
    %1464 = vmatpush.msra.mxu0 0.0
    %1465 = vmatpush.msra.mxu0 0.0
    %1466 = vmatpush.msra.mxu0 0.0
    %1467 = vmatpush.msra.mxu0 0.0
    %1468 = vmatpush.msra.mxu0 0.0
    %1469 = vmatpush.msra.mxu0 0.0
    %1470 = vmatpush.msra.mxu0 0.0
    %1471 = vmatpush.msra.mxu0 0.0
    %1472 = vmatpush.msra.mxu0 0.0
    %1473 = vmatpush.msra.mxu0 0.0
    %1474 = vmatpush.msra.mxu0 0.0
    %1475 = vmatpush.msra.mxu0 0.0
    %1476 = vmatpush.msra.mxu0 0.0
    %1477 = vmatpush.msra.mxu0 %v1460
    %1478 = vmatmul.f32.gmra.mxu0 %v1454
    %v1479 = vpop.f32.mrf.mxu0
    %v1480 = vadd.f32 0.0, %v1479
    %1481 = vmatmul.f32.gmra.mxu0 %v1457
    %v1482 = vpop.f32.mrf.mxu0
    %v1483 = vadd.f32 0.0, %v1482
    %1484 = vdwg.mxu0
    %v1485 = vmul.f32 %v1480, %v1346
    %v1486 = vmul.f32 %v1483, %v1347
    %v1488 = vsel %vm1246, %v1486, 0
    %1490 = vmatpush.msra.mxu0 0.0
    %1491 = vmatpush.msra.mxu0 0.0
    %1492 = vmatpush.msra.mxu0 0.0
    %1493 = vmatpush.msra.mxu0 0.0
    %1494 = vmatpush.msra.mxu0 0.0
    %1495 = vmatpush.msra.mxu0 0.0
    %1496 = vmatpush.msra.mxu0 0.0
    %1497 = vmatpush.msra.mxu0 0.0
    %1498 = vmatpush.msra.mxu0 0.0
    %1499 = vmatpush.msra.mxu0 0.0
    %1500 = vmatpush.msra.mxu0 0.0
    %1501 = vmatpush.msra.mxu0 0.0
    %1502 = vmatpush.msra.mxu0 0.0
    %1503 = vmatpush.msra.mxu0 0.0
    %1504 = vmatpush.msra.mxu0 %v1488
    %1505 = vmatpush.msra.mxu0 %v1485
    %1506 = vmatmul.f32.gmra.mxu0 %v1415
    %v1507 = vpop.f32.mrf.mxu0
    %v1508 = vadd.f32 0.0, %v1507
    %1509 = vdwg.mxu0
    %v1510 = vpack.c.bf16 %v1508, %v1508
    %v1515 = vunpack.c.l.b16 %v90
    %v1516 = vunpack.c.l.b16 %v91
    %v1517 = vunpack.c.l.b16 %v92
    %v1518 = vunpack.c.l.b16 %v93
    %v1519 = vpack.c.b16 %v1516, %v1515
    %v1520 = vpack.c.b16 %v1518, %v1517
    %v1524 = vsel %vm131, %v1510, 0
    %1526 = vmatpush.bf16.msra.mxu0 0
    %1527 = vmatpush.bf16.msra.mxu0 0
    %1528 = vmatpush.bf16.msra.mxu0 0
    %1529 = vmatpush.bf16.msra.mxu0 0
    %1530 = vmatpush.bf16.msra.mxu0 0
    %1531 = vmatpush.bf16.msra.mxu0 0
    %1532 = vmatpush.bf16.msra.mxu0 %v1520
    %1533 = vmatpush.bf16.msra.mxu0 %v1519
    %1534 = vmatmul.bf16.gmra.mxu0 %v1524
    %v1535 = vpop.f32.mrf.mxu0
    %v1536 = vadd.f32 0.0, %v1535
    %v1537 = vpop.f32.mrf.mxu0
    %1538 = vdwg.mxu0
    %v1539 = vperm.slane %v111, 4
    %v1540 = vadd.f32 %v1536, %v1539
    %v1545 = vunpack.c.l.b16 %v94
    %v1546 = vunpack.c.l.b16 %v95
    %v1547 = vunpack.c.l.b16 %v96
    %v1548 = vunpack.c.l.b16 %v97
    %v1549 = vpack.c.b16 %v1546, %v1545
    %v1550 = vpack.c.b16 %v1548, %v1547
    %1553 = vmatpush.bf16.msra.mxu0 0
    %1554 = vmatpush.bf16.msra.mxu0 0
    %1555 = vmatpush.bf16.msra.mxu0 0
    %1556 = vmatpush.bf16.msra.mxu0 0
    %1557 = vmatpush.bf16.msra.mxu0 0
    %1558 = vmatpush.bf16.msra.mxu0 0
    %1559 = vmatpush.bf16.msra.mxu0 %v1550
    %1560 = vmatpush.bf16.msra.mxu0 %v1549
    %1561 = vmatmul.bf16.gmra.mxu0 %v1267
    %v1562 = vpop.f32.mrf.mxu0
    %v1563 = vadd.f32 0.0, %v1562
    %v1564 = vpop.f32.mrf.mxu0
    %1565 = vdwg.mxu0
    %v1566 = vpack.c.bf16 %v1540, %v1540
    %v1571 = vunpack.c.l.b16 %v98
    %v1572 = vunpack.c.l.b16 %v99
    %v1573 = vunpack.c.l.b16 %v100
    %v1574 = vunpack.c.l.b16 %v101
    %v1575 = vpack.c.b16 %v1572, %v1571
    %v1576 = vpack.c.b16 %v1574, %v1573
    %v1580 = vsel %vm131, %v1566, 0
    %1582 = vmatpush.bf16.msra.mxu0 0
    %1583 = vmatpush.bf16.msra.mxu0 0
    %1584 = vmatpush.bf16.msra.mxu0 0
    %1585 = vmatpush.bf16.msra.mxu0 0
    %1586 = vmatpush.bf16.msra.mxu0 0
    %1587 = vmatpush.bf16.msra.mxu0 0
    %1588 = vmatpush.bf16.msra.mxu0 %v1576
    %1589 = vmatpush.bf16.msra.mxu0 %v1575
    %1590 = vmatmul.bf16.gmra.mxu0 %v1580
    %v1591 = vpop.f32.mrf.mxu0
    %v1592 = vadd.f32 0.0, %v1591
    %v1593 = vpop.f32.mrf.mxu0
    %1594 = vdwg.mxu0
    %v1595 = vadd.f32 %v1563, %v1592
    %v1596 = vperm.slane %v111, 5
    %v1597 = vadd.f32 %v1595, %v1596
    %v1598 = vmax.f32 %v1597, 0.0
    %v1599 = vpack.c.bf16 %v1598, %v1598
    %v1608 = vunpack.c.l.b16 %v102
    %v1609 = vunpack.c.l.b16 %v103
    %v1610 = vunpack.c.l.b16 %v104
    %v1611 = vunpack.c.l.b16 %v105
    %v1612 = vunpack.c.l.b16 %v106
    %v1613 = vunpack.c.l.b16 %v107
    %v1614 = vunpack.c.l.b16 %v108
    %v1615 = vunpack.c.l.b16 %v109
    %v1616 = vpack.c.b16 %v1609, %v1608
    %v1617 = vpack.c.b16 %v1611, %v1610
    %v1618 = vpack.c.b16 %v1613, %v1612
    %v1619 = vpack.c.b16 %v1615, %v1614
    %vm1624 = vcmask 523264
    %v1626 = vsel %vm1624, %v1599, 0
    %1628 = vmatpush.bf16.msra.mxu0 0
    %1629 = vmatpush.bf16.msra.mxu0 0
    %1630 = vmatpush.bf16.msra.mxu0 0
    %1631 = vmatpush.bf16.msra.mxu0 0
    %1632 = vmatpush.bf16.msra.mxu0 %v1619
    %1633 = vmatpush.bf16.msra.mxu0 %v1618
    %1634 = vmatpush.bf16.msra.mxu0 %v1617
    %1635 = vmatpush.bf16.msra.mxu0 %v1616
    %1636 = vmatmul.bf16.gmra.mxu0 %v1626
    %v1637 = vpop.f32.mrf.mxu0
    %v1638 = vadd.f32 0.0, %v1637
    %v1639 = vpop.f32.mrf.mxu0
    %1640 = vdwg.mxu0
    %v1641 = vperm.slane %v111, 6
    %v1642 = vadd.f32 %v1638, %v1641
    %vm1643 = vcmask 17408
    %v1644 = vsel %vm1643, %v1642, -inf
    %1645 = vmax.xlane.f32.xlu0 %v1644
    %v1646 = vpop.xlane.xlu0 %1645
    %v1647 = vsub.f32 %v1642, %v1646
    %v1648 = vmul.f32 %v1647, 1.442695
    %v1649 = vpow.pop %v1648
    %v1650 = vsel %vm1643, %v1649, 0.0
    %1651 = vadd.xlane.f32.xlu0 %v1650
    %v1652 = vpop.xlane.xlu0 %1651
    %v1653 = vlog2.pop %v1652
    %v1654 = vmul.f32 %v1653, 0.6931472
    %v1655 = vadd.f32 %v1646, %v1654
    %v1656 = vsub.f32 %v1642, %v1655
    %1657 = vst.msk [vmem:[#allocation5] sm:$0x3] %vm1643, %v1656
    // Predicated region
    $region22: #{_lambda_.1} parent=1 // pred_check
      _
    $region23: #{_lambda_.1} parent=1 // pred_check_branch
      %1659 = sbr.rel (0) target = $region25
    $region24: #{_lambda_.1} parent=1 // pred_region
      %1661 = vsyncadd [#allocation4], 0
      %s1663 = sshll.u32 [#allocation5], 4
      %s1664 = int_to_ptr.vmem [resolvable:$true] %s1663
      %s1665 = sshll.u32 %s4, 4
      %s1666 = int_to_ptr.hbm [resolvable:$true] %s1665
      %1668 = dma.vmem_to_hbm [thread:$0]  %s1664, 32, %s1666, [#allocation4]
    $region25: #{_lambda_.1} parent=1 // pred_fallthru
      _
    // Predicated region
    $region26: #{_lambda_.1} parent=1 // pred_check
      _
    $region27: #{_lambda_.1} parent=1 // pred_check_branch
      %1670 = sbr.rel (0) target = $region29
    $region28: #{_lambda_.1} parent=1 // pred_region
      %1672 = dma.done [#allocation4], 32
    $region29: #{_lambda_.1} parent=1 // pred_fallthru
      _
    %1673 = vsyncpa [#allocation3], 1
    %1674 = vsyncpa [#allocation4], 1

</llo_original>
